<compile_context>
chip_gen: v6e
topology: v6e:2x2x1
jax: 0.10.0
libtpu: 0.0.40
codegen_flags: <defaults>
</compile_context>

<pallas_src>
import numpy as np
import jax
import jax.numpy as jnp
from jax.experimental import pallas as pl
from jax.experimental.pallas import tpu as pltpu

NEG_SLOPE = 0.2  # LeakyReLU(0.2)


def _lrelu(y):
    return jnp.where(y > 0, y, NEG_SLOPE * y)


def _round_up(a, m):
    return pl.cdiv(a, m) * m


# ----------------------------------------------------------------------------
# Host-side (one-time) weight folding: every layer becomes a dense matrix on
# the flat (batch, length*channels) activation layout.
# ----------------------------------------------------------------------------
def _conv_same_matrix(w, L):
    # w: (3, cin, cout) Conv1d(k=3, stride=1, pad=1, bias=False) weights.
    # Returns the block-tridiagonal (L*cin, L*cout) matrix such that
    #   out[:, j*cout+co] = sum_{t, ci} in[:, (j+t-1)*cin+ci] * w[t, ci, co]
    # with zero ("same") padding at the sequence ends.
    w = np.asarray(w, np.float32)
    _, cin, cout = w.shape
    m = np.zeros((L, cin, L, cout), np.float32)
    for j in range(L):
        for t in range(3):
            i = j + t - 1
            if 0 <= i < L:
                m[i, :, j, :] = w[t]
    return m.reshape(L * cin, L * cout)


def _upsample2_matrix(L, c):
    # Nearest-neighbour x2 upsample as an exact 0/1 (L*c, 2L*c) matrix:
    # u[j] = a[j // 2].
    m = np.zeros((L, c, 2 * L, c), np.float32)
    eye = np.eye(c, dtype=np.float32)
    for j in range(2 * L):
        m[j // 2, :, j, :] = eye
    return m.reshape(L * c, 2 * L * c)


def fold_params(params, dtype=jnp.bfloat16):
    """Fold ConvTranspose1d + 4x(upsample, conv, conv) into 9 dense matrices.

    Returns [g1, g2a, g2b, g3a, g3b, g4a, g4b, g5a, g5b]; the nearest-x2
    upsample preceding each stage is pre-multiplied into that stage's first
    conv matrix.  With ngf=8 all matrices are (<=256, <=256):
      (16,128),(128,256),(256,128),(128,256),(256,128),(128,256),(256,128),
      (128,256),(256,64) — ~0.5 MB total in bf16.
    """
    p = {k: np.asarray(v, np.float32) for k, v in params.items()}
    wd = p["deconv1"]                                   # (2, embed, ngf*8)
    embed = wd.shape[1]
    # ConvTranspose1d(k=2, s=1, p=0) on a length-1 input == two matmuls; as one
    # matrix into the flat length-2 layout: g1[e, t*C+c] = wd[t, e, c].
    g = [np.transpose(wd, (1, 0, 2)).reshape(embed, -1)]
    L = 2
    for a, b in (("conv2a", "conv2b"), ("conv3a", "conv3b"),
                 ("conv4a", "conv4b"), ("conv5a", "conv5b")):
        cin = p[a].shape[1]                              # channels entering stage
        up = _upsample2_matrix(L, cin)                   # L -> 2L
        L *= 2
        g.append(up @ _conv_same_matrix(p[a], L))        # upsample folded into conv "a"
        g.append(_conv_same_matrix(p[b], L))
    return [jnp.asarray(m, dtype) for m in g]


# ----------------------------------------------------------------------------
# Fused kernel: nine MXU matmuls (bf16 operands, f32 accumulate) + LeakyReLU.
# ----------------------------------------------------------------------------
def _generator_fused_kernel(x_ref, *refs):
    w_refs, o_ref = refs[:-1], refs[-1]
    h = x_ref[...].astype(jnp.bfloat16)                  # (bt, embed_dim)
    for w_ref in w_refs[:-1]:                            # all layers but the last
        y = jnp.dot(h, w_ref[...], preferred_element_type=jnp.float32)
        h = _lrelu(y).astype(jnp.bfloat16)               # LeakyReLU(0.2)
    # Final conv5b has no activation; store lane-dense (bt, 64) block.
    o_ref[...] = jnp.dot(h, w_refs[-1][...],
                         preferred_element_type=jnp.float32).astype(o_ref.dtype)


def generator_conv_forward(folded, x, *, batch_tile=128):
    """x: (N, embed_dim) -> (N, 32, 2)  (== PyTorch (N, 2, 32), last 2 axes swapped)."""
    n, embed_dim = x.shape
    bt = _round_up(min(batch_tile, _round_up(n, 8)), 8)
    n_pad = _round_up(n, bt)
    if n_pad != n:
        x = jnp.pad(x, ((0, n_pad - n), (0, 0)))         # padded rows sliced off below
    out_cols = folded[-1].shape[1]                        # 32 positions * 2 channels = 64

    out_flat = pl.pallas_call(
        _generator_fused_kernel,
        out_shape=jax.ShapeDtypeStruct((n_pad, out_cols), jnp.float32),
        grid=(n_pad // bt,),
        in_specs=[pl.BlockSpec((bt, embed_dim), lambda i: (i, 0))]
                + [pl.BlockSpec(w.shape, lambda i: (0, 0)) for w in folded],
        out_specs=pl.BlockSpec((bt, out_cols), lambda i: (i, 0)),
        compiler_params=pltpu.CompilerParams(dimension_semantics=("parallel",)),
    )(x, *folded)
    return out_flat[:n].reshape(n, out_cols // 2, 2)


# ----------------------------------------------------------------------------
# Parameter setup (deterministic synthetic weights, stored as (k, Cin, Cout)):
#   ConvTranspose1d torch weight (Cin, Cout, k) -> w[t] = W[:, :, t]
#   Conv1d          torch weight (Cout, Cin, k) -> w[t, ci, co] = W[co, ci, t]
# ----------------------------------------------------------------------------
def init_params(key, ngf, embed_dim):
    ks = jax.random.split(key, 9)

    def w(k, kk, cin, cout):
        return jax.random.normal(k, (kk, cin, cout), jnp.float32) / jnp.sqrt(
            float(cin * kk))

    return {
        "deconv1": w(ks[0], 2, embed_dim, ngf * 8),
        "conv2a": w(ks[1], 3, ngf * 8, ngf * 8),
        "conv2b": w(ks[2], 3, ngf * 8, ngf * 4),
        "conv3a": w(ks[3], 3, ngf * 4, ngf * 4),
        "conv3b": w(ks[4], 3, ngf * 4, ngf * 2),
        "conv4a": w(ks[5], 3, ngf * 2, ngf * 2),
        "conv4b": w(ks[6], 3, ngf * 2, ngf * 1),
        "conv5a": w(ks[7], 3, ngf * 1, ngf * 1),
        "conv5b": w(ks[8], 3, ngf * 1, 2),
    }


# ----------------------------------------------------------------------------
# Pure-JAX reference of the ORIGINAL (un-folded) math, f32, for verification.
# ----------------------------------------------------------------------------
def _ref_conv3(x, w, lrelu=True):
    L = x.shape[1]
    xp = jnp.pad(x, ((0, 0), (1, 1), (0, 0)))
    y = sum(jnp.einsum("nlc,cd->nld", xp[:, k:k + L, :], w[k]) for k in range(3))
    return _lrelu(y) if lrelu else y


def reference_forward(params, x):
    h = _lrelu(jnp.einsum("nc,tcd->ntd", x, params["deconv1"]))
    h = jnp.repeat(h, 2, axis=1)
    h = _ref_conv3(h, params["conv2a"]); h = _ref_conv3(h, params["conv2b"])
    h = jnp.repeat(h, 2, axis=1)
    h = _ref_conv3(h, params["conv3a"]); h = _ref_conv3(h, params["conv3b"])
    h = jnp.repeat(h, 2, axis=1)
    h = _ref_conv3(h, params["conv4a"]); h = _ref_conv3(h, params["conv4b"])
    h = jnp.repeat(h, 2, axis=1)
    h = _ref_conv3(h, params["conv5a"])
    h = _ref_conv3(h, params["conv5b"], lrelu=False)
    return h


if __name__ == "__main__":
    ngf, embed_dim, batch = 8, 16, 256          # batch_tile=128 -> grid=(2,): both v7x TCs busy
    key = jax.random.PRNGKey(0)
    kp, kx = jax.random.split(key)
    params = init_params(kp, ngf, embed_dim)
    folded = fold_params(params)                # one-time host-side weight folding (bf16)
    x = jax.random.normal(kx, (batch, embed_dim), jnp.float32)

    out = jax.block_until_ready(generator_conv_forward(folded, x, batch_tile=128))
    ref = jax.block_until_ready(reference_forward(params, x))

    assert out.shape == (batch, 32, 2), out.shape   # == torch (N, 2, 32) transposed
    err = float(jnp.max(jnp.abs(out - ref)))
    scale = float(jnp.max(jnp.abs(ref)))
    # bf16 MXU operands (f32 accumulation) over 9 layers: allow a few percent
    # relative error vs. the f32 reference.
    assert err <= 1e-2 + 3e-2 * scale, f"mismatch vs reference: max err={err}, ref scale={scale}"
    print("KERNEL_OK")
</pallas_src>

<mosaic_0001>
module attributes {stable_mosaic.version = 11 : i64} {
  func.func @_generator_fused_kernel(%arg0: i32, %arg1: memref<128x16xf32, #tpu.memory_space<vmem>>, %arg2: memref<16x128xbf16, #tpu.memory_space<vmem>>, %arg3: memref<128x256xbf16, #tpu.memory_space<vmem>>, %arg4: memref<256x128xbf16, #tpu.memory_space<vmem>>, %arg5: memref<128x256xbf16, #tpu.memory_space<vmem>>, %arg6: memref<256x128xbf16, #tpu.memory_space<vmem>>, %arg7: memref<128x256xbf16, #tpu.memory_space<vmem>>, %arg8: memref<256x128xbf16, #tpu.memory_space<vmem>>, %arg9: memref<128x256xbf16, #tpu.memory_space<vmem>>, %arg10: memref<256x64xbf16, #tpu.memory_space<vmem>>, %arg11: memref<128x64xf32, #tpu.memory_space<vmem>>) attributes {dimension_semantics = [#tpu.dimension_semantics<parallel>], iteration_bounds = array<i64: 2>, scalar_prefetch = 0 : i64, scratch_operands = 0 : i64, tpu.core_type = #tpu.core_type<tc>, window_params = [{transform_indices = @transform_0, window_bounds = array<i64: 128, 16>}, {pipeline_mode = #tpu.pipeline_mode<synchronous>, transform_indices = @transform_1, window_bounds = array<i64: 16, 128>}, {pipeline_mode = #tpu.pipeline_mode<synchronous>, transform_indices = @transform_2, window_bounds = array<i64: 128, 256>}, {pipeline_mode = #tpu.pipeline_mode<synchronous>, transform_indices = @transform_3, window_bounds = array<i64: 256, 128>}, {pipeline_mode = #tpu.pipeline_mode<synchronous>, transform_indices = @transform_4, window_bounds = array<i64: 128, 256>}, {pipeline_mode = #tpu.pipeline_mode<synchronous>, transform_indices = @transform_5, window_bounds = array<i64: 256, 128>}, {pipeline_mode = #tpu.pipeline_mode<synchronous>, transform_indices = @transform_6, window_bounds = array<i64: 128, 256>}, {pipeline_mode = #tpu.pipeline_mode<synchronous>, transform_indices = @transform_7, window_bounds = array<i64: 256, 128>}, {pipeline_mode = #tpu.pipeline_mode<synchronous>, transform_indices = @transform_8, window_bounds = array<i64: 128, 256>}, {pipeline_mode = #tpu.pipeline_mode<synchronous>, transform_indices = @transform_9, window_bounds = array<i64: 256, 64>}, {transform_indices = @transform_10, window_bounds = array<i64: 128, 64>}]} {
    %c0 = arith.constant 0 : index
    %c0_0 = arith.constant 0 : index
    %0 = vector.load %arg1[%c0, %c0_0] : memref<128x16xf32, #tpu.memory_space<vmem>>, vector<128x16xf32>
    %1 = arith.truncf %0 : vector<128x16xf32> to vector<128x16xbf16>
    %c0_1 = arith.constant 0 : index
    %c0_2 = arith.constant 0 : index
    %2 = vector.load %arg2[%c0_1, %c0_2] : memref<16x128xbf16, #tpu.memory_space<vmem>>, vector<16x128xbf16>
    %cst = arith.constant dense<0.000000e+00> : vector<128x128xf32>
    %3 = tpu.matmul %1, %2, %cst {dimension_numbers = #tpu.dot_dimension_numbers<[1], [0], [0], [1], [0, 0, 1, 1], [], []>} : vector<128x16xbf16>, vector<16x128xbf16>, vector<128x128xf32> -> vector<128x128xf32>
    %cst_3 = arith.constant 0.000000e+00 : f32
    %4 = vector.broadcast %cst_3 : f32 to vector<128x128xf32>
    %5 = arith.cmpf ogt, %3, %4 : vector<128x128xf32>
    %cst_4 = arith.constant 2.000000e-01 : f32
    %6 = vector.broadcast %cst_4 : f32 to vector<128x128xf32>
    %7 = arith.mulf %6, %3 : vector<128x128xf32>
    %8 = arith.select %5, %3, %7 : vector<128x128xi1>, vector<128x128xf32>
    %9 = arith.truncf %8 : vector<128x128xf32> to vector<128x128xbf16>
    %c0_5 = arith.constant 0 : index
    %c0_6 = arith.constant 0 : index
    %10 = vector.load %arg3[%c0_5, %c0_6] : memref<128x256xbf16, #tpu.memory_space<vmem>>, vector<128x256xbf16>
    %cst_7 = arith.constant dense<0.000000e+00> : vector<128x256xf32>
    %11 = tpu.matmul %9, %10, %cst_7 {dimension_numbers = #tpu.dot_dimension_numbers<[1], [0], [0], [1], [0, 0, 1, 1], [], []>} : vector<128x128xbf16>, vector<128x256xbf16>, vector<128x256xf32> -> vector<128x256xf32>
    %cst_8 = arith.constant 0.000000e+00 : f32
    %12 = vector.broadcast %cst_8 : f32 to vector<128x256xf32>
    %13 = arith.cmpf ogt, %11, %12 : vector<128x256xf32>
    %cst_9 = arith.constant 2.000000e-01 : f32
    %14 = vector.broadcast %cst_9 : f32 to vector<128x256xf32>
    %15 = arith.mulf %14, %11 : vector<128x256xf32>
    %16 = arith.select %13, %11, %15 : vector<128x256xi1>, vector<128x256xf32>
    %17 = arith.truncf %16 : vector<128x256xf32> to vector<128x256xbf16>
    %c0_10 = arith.constant 0 : index
    %c0_11 = arith.constant 0 : index
    %18 = vector.load %arg4[%c0_10, %c0_11] : memref<256x128xbf16, #tpu.memory_space<vmem>>, vector<256x128xbf16>
    %cst_12 = arith.constant dense<0.000000e+00> : vector<128x128xf32>
    %19 = tpu.matmul %17, %18, %cst_12 {dimension_numbers = #tpu.dot_dimension_numbers<[1], [0], [0], [1], [0, 0, 1, 1], [], []>} : vector<128x256xbf16>, vector<256x128xbf16>, vector<128x128xf32> -> vector<128x128xf32>
    %cst_13 = arith.constant 0.000000e+00 : f32
    %20 = vector.broadcast %cst_13 : f32 to vector<128x128xf32>
    %21 = arith.cmpf ogt, %19, %20 : vector<128x128xf32>
    %cst_14 = arith.constant 2.000000e-01 : f32
    %22 = vector.broadcast %cst_14 : f32 to vector<128x128xf32>
    %23 = arith.mulf %22, %19 : vector<128x128xf32>
    %24 = arith.select %21, %19, %23 : vector<128x128xi1>, vector<128x128xf32>
    %25 = arith.truncf %24 : vector<128x128xf32> to vector<128x128xbf16>
    %c0_15 = arith.constant 0 : index
    %c0_16 = arith.constant 0 : index
    %26 = vector.load %arg5[%c0_15, %c0_16] : memref<128x256xbf16, #tpu.memory_space<vmem>>, vector<128x256xbf16>
    %cst_17 = arith.constant dense<0.000000e+00> : vector<128x256xf32>
    %27 = tpu.matmul %25, %26, %cst_17 {dimension_numbers = #tpu.dot_dimension_numbers<[1], [0], [0], [1], [0, 0, 1, 1], [], []>} : vector<128x128xbf16>, vector<128x256xbf16>, vector<128x256xf32> -> vector<128x256xf32>
    %cst_18 = arith.constant 0.000000e+00 : f32
    %28 = vector.broadcast %cst_18 : f32 to vector<128x256xf32>
    %29 = arith.cmpf ogt, %27, %28 : vector<128x256xf32>
    %cst_19 = arith.constant 2.000000e-01 : f32
    %30 = vector.broadcast %cst_19 : f32 to vector<128x256xf32>
    %31 = arith.mulf %30, %27 : vector<128x256xf32>
    %32 = arith.select %29, %27, %31 : vector<128x256xi1>, vector<128x256xf32>
    %33 = arith.truncf %32 : vector<128x256xf32> to vector<128x256xbf16>
    %c0_20 = arith.constant 0 : index
    %c0_21 = arith.constant 0 : index
    %34 = vector.load %arg6[%c0_20, %c0_21] : memref<256x128xbf16, #tpu.memory_space<vmem>>, vector<256x128xbf16>
    %cst_22 = arith.constant dense<0.000000e+00> : vector<128x128xf32>
    %35 = tpu.matmul %33, %34, %cst_22 {dimension_numbers = #tpu.dot_dimension_numbers<[1], [0], [0], [1], [0, 0, 1, 1], [], []>} : vector<128x256xbf16>, vector<256x128xbf16>, vector<128x128xf32> -> vector<128x128xf32>
    %cst_23 = arith.constant 0.000000e+00 : f32
    %36 = vector.broadcast %cst_23 : f32 to vector<128x128xf32>
    %37 = arith.cmpf ogt, %35, %36 : vector<128x128xf32>
    %cst_24 = arith.constant 2.000000e-01 : f32
    %38 = vector.broadcast %cst_24 : f32 to vector<128x128xf32>
    %39 = arith.mulf %38, %35 : vector<128x128xf32>
    %40 = arith.select %37, %35, %39 : vector<128x128xi1>, vector<128x128xf32>
    %41 = arith.truncf %40 : vector<128x128xf32> to vector<128x128xbf16>
    %c0_25 = arith.constant 0 : index
    %c0_26 = arith.constant 0 : index
    %42 = vector.load %arg7[%c0_25, %c0_26] : memref<128x256xbf16, #tpu.memory_space<vmem>>, vector<128x256xbf16>
    %cst_27 = arith.constant dense<0.000000e+00> : vector<128x256xf32>
    %43 = tpu.matmul %41, %42, %cst_27 {dimension_numbers = #tpu.dot_dimension_numbers<[1], [0], [0], [1], [0, 0, 1, 1], [], []>} : vector<128x128xbf16>, vector<128x256xbf16>, vector<128x256xf32> -> vector<128x256xf32>
    %cst_28 = arith.constant 0.000000e+00 : f32
    %44 = vector.broadcast %cst_28 : f32 to vector<128x256xf32>
    %45 = arith.cmpf ogt, %43, %44 : vector<128x256xf32>
    %cst_29 = arith.constant 2.000000e-01 : f32
    %46 = vector.broadcast %cst_29 : f32 to vector<128x256xf32>
    %47 = arith.mulf %46, %43 : vector<128x256xf32>
    %48 = arith.select %45, %43, %47 : vector<128x256xi1>, vector<128x256xf32>
    %49 = arith.truncf %48 : vector<128x256xf32> to vector<128x256xbf16>
    %c0_30 = arith.constant 0 : index
    %c0_31 = arith.constant 0 : index
    %50 = vector.load %arg8[%c0_30, %c0_31] : memref<256x128xbf16, #tpu.memory_space<vmem>>, vector<256x128xbf16>
    %cst_32 = arith.constant dense<0.000000e+00> : vector<128x128xf32>
    %51 = tpu.matmul %49, %50, %cst_32 {dimension_numbers = #tpu.dot_dimension_numbers<[1], [0], [0], [1], [0, 0, 1, 1], [], []>} : vector<128x256xbf16>, vector<256x128xbf16>, vector<128x128xf32> -> vector<128x128xf32>
    %cst_33 = arith.constant 0.000000e+00 : f32
    %52 = vector.broadcast %cst_33 : f32 to vector<128x128xf32>
    %53 = arith.cmpf ogt, %51, %52 : vector<128x128xf32>
    %cst_34 = arith.constant 2.000000e-01 : f32
    %54 = vector.broadcast %cst_34 : f32 to vector<128x128xf32>
    %55 = arith.mulf %54, %51 : vector<128x128xf32>
    %56 = arith.select %53, %51, %55 : vector<128x128xi1>, vector<128x128xf32>
    %57 = arith.truncf %56 : vector<128x128xf32> to vector<128x128xbf16>
    %c0_35 = arith.constant 0 : index
    %c0_36 = arith.constant 0 : index
    %58 = vector.load %arg9[%c0_35, %c0_36] : memref<128x256xbf16, #tpu.memory_space<vmem>>, vector<128x256xbf16>
    %cst_37 = arith.constant dense<0.000000e+00> : vector<128x256xf32>
    %59 = tpu.matmul %57, %58, %cst_37 {dimension_numbers = #tpu.dot_dimension_numbers<[1], [0], [0], [1], [0, 0, 1, 1], [], []>} : vector<128x128xbf16>, vector<128x256xbf16>, vector<128x256xf32> -> vector<128x256xf32>
    %cst_38 = arith.constant 0.000000e+00 : f32
    %60 = vector.broadcast %cst_38 : f32 to vector<128x256xf32>
    %61 = arith.cmpf ogt, %59, %60 : vector<128x256xf32>
    %cst_39 = arith.constant 2.000000e-01 : f32
    %62 = vector.broadcast %cst_39 : f32 to vector<128x256xf32>
    %63 = arith.mulf %62, %59 : vector<128x256xf32>
    %64 = arith.select %61, %59, %63 : vector<128x256xi1>, vector<128x256xf32>
    %65 = arith.truncf %64 : vector<128x256xf32> to vector<128x256xbf16>
    %c0_40 = arith.constant 0 : index
    %c0_41 = arith.constant 0 : index
    %66 = vector.load %arg10[%c0_40, %c0_41] : memref<256x64xbf16, #tpu.memory_space<vmem>>, vector<256x64xbf16>
    %cst_42 = arith.constant dense<0.000000e+00> : vector<128x64xf32>
    %67 = tpu.matmul %65, %66, %cst_42 {dimension_numbers = #tpu.dot_dimension_numbers<[1], [0], [0], [1], [0, 0, 1, 1], [], []>} : vector<128x256xbf16>, vector<256x64xbf16>, vector<128x64xf32> -> vector<128x64xf32>
    %c0_43 = arith.constant 0 : index
    %c0_44 = arith.constant 0 : index
    %68 = vector.load %arg11[%c0_43, %c0_44] : memref<128x64xf32, #tpu.memory_space<vmem>>, vector<128x64xf32>
    tpu.vector_store %arg11[%c0_43, %c0_44], %67 {strides = array<i32>} : memref<128x64xf32, #tpu.memory_space<vmem>>, vector<128x64xf32>,
    return
  }
  func.func @transform_0(%arg0: i32) -> (i32, i32) {
    %c0_i32 = arith.constant 0 : i32
    %c0_i32_0 = arith.constant 0 : i32
    return %arg0, %c0_i32 : i32, i32
  }
  func.func @transform_1(%arg0: i32) -> (i32, i32) {
    %c0_i32 = arith.constant 0 : i32
    %c0_i32_0 = arith.constant 0 : i32
    %c0_i32_1 = arith.constant 0 : i32
    return %c0_i32, %c0_i32_0 : i32, i32
  }
  func.func @transform_2(%arg0: i32) -> (i32, i32) {
    %c0_i32 = arith.constant 0 : i32
    %c0_i32_0 = arith.constant 0 : i32
    %c0_i32_1 = arith.constant 0 : i32
    return %c0_i32, %c0_i32_0 : i32, i32
  }
  func.func @transform_3(%arg0: i32) -> (i32, i32) {
    %c0_i32 = arith.constant 0 : i32
    %c0_i32_0 = arith.constant 0 : i32
    %c0_i32_1 = arith.constant 0 : i32
    return %c0_i32, %c0_i32_0 : i32, i32
  }
  func.func @transform_4(%arg0: i32) -> (i32, i32) {
    %c0_i32 = arith.constant 0 : i32
    %c0_i32_0 = arith.constant 0 : i32
    %c0_i32_1 = arith.constant 0 : i32
    return %c0_i32, %c0_i32_0 : i32, i32
  }
  func.func @transform_5(%arg0: i32) -> (i32, i32) {
    %c0_i32 = arith.constant 0 : i32
    %c0_i32_0 = arith.constant 0 : i32
    %c0_i32_1 = arith.constant 0 : i32
    return %c0_i32, %c0_i32_0 : i32, i32
  }
  func.func @transform_6(%arg0: i32) -> (i32, i32) {
    %c0_i32 = arith.constant 0 : i32
    %c0_i32_0 = arith.constant 0 : i32
    %c0_i32_1 = arith.constant 0 : i32
    return %c0_i32, %c0_i32_0 : i32, i32
  }
  func.func @transform_7(%arg0: i32) -> (i32, i32) {
    %c0_i32 = arith.constant 0 : i32
    %c0_i32_0 = arith.constant 0 : i32
    %c0_i32_1 = arith.constant 0 : i32
    return %c0_i32, %c0_i32_0 : i32, i32
  }
  func.func @transform_8(%arg0: i32) -> (i32, i32) {
    %c0_i32 = arith.constant 0 : i32
    %c0_i32_0 = arith.constant 0 : i32
    %c0_i32_1 = arith.constant 0 : i32
    return %c0_i32, %c0_i32_0 : i32, i32
  }
  func.func @transform_9(%arg0: i32) -> (i32, i32) {
    %c0_i32 = arith.constant 0 : i32
    %c0_i32_0 = arith.constant 0 : i32
    %c0_i32_1 = arith.constant 0 : i32
    return %c0_i32, %c0_i32_0 : i32, i32
  }
  func.func @transform_10(%arg0: i32) -> (i32, i32) {
    %c0_i32 = arith.constant 0 : i32
    %c0_i32_0 = arith.constant 0 : i32
    return %arg0, %c0_i32 : i32, i32
  }
}

</mosaic_0001>

<llo_original>
// kernel: tpu_custom_call.1
$region0: #{tpu_custom_call.1}
  #allocation0 [shape = 'u32[]', space=smem, size = 0x4, offset = 0x4, fixed_abs, tag = 'smem constant byte address 0x4 - core index']
  #allocation1 [shape = 'u32[144,128]{1,0:T(1,128)}', space=vmem, size = 0x12000, scoped, tag = 'internal scratch']
  %s0 = inlined_call_operand.vmem [shape: f32[256,16], index: 0, kind: input, shape index: {}]
  %s1 = inlined_call_operand.vmem [shape: bf16[16,128], index: 1, kind: input, shape index: {}]
  %s2 = inlined_call_operand.vmem [shape: bf16[128,256], index: 2, kind: input, shape index: {}]
  %s3 = inlined_call_operand.vmem [shape: bf16[256,128], index: 3, kind: input, shape index: {}]
  %s4 = inlined_call_operand.vmem [shape: bf16[128,256], index: 4, kind: input, shape index: {}]
  %s5 = inlined_call_operand.hbm [shape: bf16[256,128], index: 5, kind: input, shape index: {}]
  %s6 = inlined_call_operand.hbm [shape: bf16[128,256], index: 6, kind: input, shape index: {}]
  %s7 = inlined_call_operand.hbm [shape: bf16[256,128], index: 7, kind: input, shape index: {}]
  %s8 = inlined_call_operand.hbm [shape: bf16[128,256], index: 8, kind: input, shape index: {}]
  %s9 = inlined_call_operand.vmem [shape: bf16[256,64], index: 9, kind: input, shape index: {}]
  %s10 = inlined_call_operand.vmem [shape: f32[256,64], index: 10, kind: output, shape index: {}]
  %s11 = sld [smem:[#allocation0]]
  $region89: #{tpu_custom_call.1} parent=0
    _
  %s13 = ssub.s32 1, %s11
  %s14 = scalar_select 0, %s13, %s11
  $region1: #{tpu_custom_call.1} parent=0
    #allocation2 [shape = 'u8[65536]{0}', space=vmem, size = 0x10000, scoped, tag = 'input window, operand 5, single buffered']
    #allocation3 [shape = 's32[2]{0}', space=sflag, size = 0x8, scoped, tag = 'scoped memory for tpu_custom_call.1']
    #allocation4 [shape = 'u8[65536]{0}', space=vmem, size = 0x10000, scoped, tag = 'input window, operand 6, single buffered']
    #allocation5 [shape = 's32[1]{0}', space=sflag, size = 0x4, scoped, tag = 'scoped memory for tpu_custom_call.1']
    #allocation6 [shape = 'u8[65536]{0}', space=vmem, size = 0x10000, scoped, tag = 'input window, operand 7, single buffered']
    #allocation7 [shape = 'u8[65536]{0}', space=vmem, size = 0x10000, scoped, tag = 'input window, operand 8, single buffered']
    #allocation8 [shape = 's32[1]{0}', space=sflag, size = 0x4, scoped, tag = 'scoped memory for tpu_custom_call.1']
    %15 = vsyncpa [#allocation3], 0
    %16 = vsyncpa [#allocation5], 0
    %17 = vsyncpa [#allocation8], 0
    loop: start=0, step=1, limit=4
    $region2: #{tpu_custom_call.1} parent=1 // loop_pre_header
      _
    $region3: #{tpu_custom_call.1} parent=1 // loop_header
      %s19 = sphi 0, %s23
      %p20 = scmp.ge.s32.totalorder %s19, 4
      %s29 = sphi 0, %s31
      %s32 = sphi 0, %s29
      %s33 = sphi 0, %s32
      %s49 = sphi 0, %s33
      %s53 = sphi 0, %s53
      %s55 = sphi 0, %s53
      %s56 = sphi 0, %s55
      %s70 = sphi 0, %s56
      %s74 = sphi 0, %s74
      %s76 = sphi 0, %s74
      %s77 = sphi 0, %s76
      %s91 = sphi 0, %s77
      %s95 = sphi 0, %s95
      %s97 = sphi 0, %s95
      %s98 = sphi 0, %s97
      %s112 = sphi 0, %s98
      %s116 = sphi 0, %s116
      %s118 = sphi 0, %s116
      %s119 = sphi 0, %s118
      %s133 = sphi 0, %s119
      %s137 = sphi 0, %s137
      %s139 = sphi 0, %s137
      %s140 = sphi 0, %s139
      %s154 = sphi 0, %s140
      %s158 = sphi 0, %s158
      %s160 = sphi 0, %s158
      %s161 = sphi 0, %s160
      %s175 = sphi 0, %s161
      %s179 = sphi 0, %s179
      %s181 = sphi 0, %s179
      %s182 = sphi 0, %s181
      %s196 = sphi 0, %s182
      %s200 = sphi 0, %s200
      %s202 = sphi 0, %s200
      %s203 = sphi 0, %s202
      %s217 = sphi 0, %s203
      %s221 = sphi 0, %s221
      %s223 = sphi 0, %s221
      %s224 = sphi 0, %s223
      %s238 = sphi 0, %s224
      %s244 = sphi 0, %s246
      %s247 = sphi 0, %s244
      %s248 = sphi 0, %s247
      %s264 = sphi 0, %s248
    $region4: #{tpu_custom_call.1} parent=1 // loop_header_branch
      %22 = sbr.rel (%p20) target = $region8
    $region5: #{tpu_custom_call.1} parent=1 // loop_body
      %s24 = ssub.s32 %s19, 1
      %s25 = ssub.s32 %s19, 2
      %s26 = sadd.s32 %s19, 1
      %s27 = ssub.s32 %s19, %s26
      %p28 = scmp.eq.s32.totalorder %s27, 0
      %s30 = sadd.s32 %s29, 1
      %s31 = scalar_select %p28, %s29, %s30
      %p34 = pneg %p28
      %p35 = scmp.eq.s32.totalorder %s19, 1
      %p36 = por %p34, %p35
      %p37 = scmp.ne.s32.totalorder %s29, %s32
      %p38 = scmp.eq.s32.totalorder %s19, 0
      %p39 = por %p37, %p38
      %p40 = scmp.ne.s32.totalorder %s29, %s32
      %p41 = scmp.eq.s32.totalorder %s24, 1
      %p42 = por %p40, %p41
      %p43 = scmp.ne.s32.totalorder %s32, %s33
      %p44 = scmp.eq.s32.totalorder %s24, 0
      %p45 = por %p43, %p44
      %p46 = scmp.ne.s32.totalorder %s32, %s33
      %p47 = scmp.eq.s32.totalorder %s25, 1
      %p48 = por %p46, %p47
      %p50 = scmp.ne.s32.totalorder %s33, %s49
      %p51 = scmp.eq.s32.totalorder %s25, 0
      %p52 = por %p50, %p51
      %s54 = sadd.s32 %s53, 1
      %p57 = scmp.eq.s32.totalorder %s19, 1
      %p58 = scmp.ne.s32.totalorder %s53, %s55
      %p59 = scmp.eq.s32.totalorder %s19, 0
      %p60 = por %p58, %p59
      %p61 = scmp.ne.s32.totalorder %s53, %s55
      %p62 = scmp.eq.s32.totalorder %s24, 1
      %p63 = por %p61, %p62
      %p64 = scmp.ne.s32.totalorder %s55, %s56
      %p65 = scmp.eq.s32.totalorder %s24, 0
      %p66 = por %p64, %p65
      %p67 = scmp.ne.s32.totalorder %s55, %s56
      %p68 = scmp.eq.s32.totalorder %s25, 1
      %p69 = por %p67, %p68
      %p71 = scmp.ne.s32.totalorder %s56, %s70
      %p72 = scmp.eq.s32.totalorder %s25, 0
      %p73 = por %p71, %p72
      %s75 = sadd.s32 %s74, 1
      %p78 = scmp.eq.s32.totalorder %s19, 1
      %p79 = scmp.ne.s32.totalorder %s74, %s76
      %p80 = scmp.eq.s32.totalorder %s19, 0
      %p81 = por %p79, %p80
      %p82 = scmp.ne.s32.totalorder %s74, %s76
      %p83 = scmp.eq.s32.totalorder %s24, 1
      %p84 = por %p82, %p83
      %p85 = scmp.ne.s32.totalorder %s76, %s77
      %p86 = scmp.eq.s32.totalorder %s24, 0
      %p87 = por %p85, %p86
      %p88 = scmp.ne.s32.totalorder %s76, %s77
      %p89 = scmp.eq.s32.totalorder %s25, 1
      %p90 = por %p88, %p89
      %p92 = scmp.ne.s32.totalorder %s77, %s91
      %p93 = scmp.eq.s32.totalorder %s25, 0
      %p94 = por %p92, %p93
      %s96 = sadd.s32 %s95, 1
      %p99 = scmp.eq.s32.totalorder %s19, 1
      %p100 = scmp.ne.s32.totalorder %s95, %s97
      %p101 = scmp.eq.s32.totalorder %s19, 0
      %p102 = por %p100, %p101
      %p103 = scmp.ne.s32.totalorder %s95, %s97
      %p104 = scmp.eq.s32.totalorder %s24, 1
      %p105 = por %p103, %p104
      %p106 = scmp.ne.s32.totalorder %s97, %s98
      %p107 = scmp.eq.s32.totalorder %s24, 0
      %p108 = por %p106, %p107
      %p109 = scmp.ne.s32.totalorder %s97, %s98
      %p110 = scmp.eq.s32.totalorder %s25, 1
      %p111 = por %p109, %p110
      %p113 = scmp.ne.s32.totalorder %s98, %s112
      %p114 = scmp.eq.s32.totalorder %s25, 0
      %p115 = por %p113, %p114
      %s117 = sadd.s32 %s116, 1
      %p120 = scmp.eq.s32.totalorder %s19, 1
      %p121 = scmp.ne.s32.totalorder %s116, %s118
      %p122 = scmp.eq.s32.totalorder %s19, 0
      %p123 = por %p121, %p122
      %p124 = scmp.ne.s32.totalorder %s116, %s118
      %p125 = scmp.eq.s32.totalorder %s24, 1
      %p126 = por %p124, %p125
      %p127 = scmp.ne.s32.totalorder %s118, %s119
      %p128 = scmp.eq.s32.totalorder %s24, 0
      %p129 = por %p127, %p128
      %p130 = scmp.ne.s32.totalorder %s118, %s119
      %p131 = scmp.eq.s32.totalorder %s25, 1
      %p132 = por %p130, %p131
      %p134 = scmp.ne.s32.totalorder %s119, %s133
      %p135 = scmp.eq.s32.totalorder %s25, 0
      %p136 = por %p134, %p135
      %s138 = sadd.s32 %s137, 1
      %p141 = scmp.eq.s32.totalorder %s19, 1
      %p142 = scmp.ne.s32.totalorder %s137, %s139
      %p143 = scmp.eq.s32.totalorder %s19, 0
      %p144 = por %p142, %p143
      %p145 = scmp.ne.s32.totalorder %s137, %s139
      %p146 = scmp.eq.s32.totalorder %s24, 1
      %p147 = por %p145, %p146
      %p148 = scmp.ne.s32.totalorder %s139, %s140
      %p149 = scmp.eq.s32.totalorder %s24, 0
      %p150 = por %p148, %p149
      %p151 = scmp.ne.s32.totalorder %s139, %s140
      %p152 = scmp.eq.s32.totalorder %s25, 1
      %p153 = por %p151, %p152
      %p155 = scmp.ne.s32.totalorder %s140, %s154
      %p156 = scmp.eq.s32.totalorder %s25, 0
      %p157 = por %p155, %p156
      %s159 = sadd.s32 %s158, 1
      %p162 = scmp.eq.s32.totalorder %s19, 1
      %p163 = scmp.ne.s32.totalorder %s158, %s160
      %p164 = scmp.eq.s32.totalorder %s19, 0
      %p165 = por %p163, %p164
      %p166 = scmp.ne.s32.totalorder %s158, %s160
      %p167 = scmp.eq.s32.totalorder %s24, 1
      %p168 = por %p166, %p167
      %p169 = scmp.ne.s32.totalorder %s160, %s161
      %p170 = scmp.eq.s32.totalorder %s24, 0
      %p171 = por %p169, %p170
      %p172 = scmp.ne.s32.totalorder %s160, %s161
      %p173 = scmp.eq.s32.totalorder %s25, 1
      %p174 = por %p172, %p173
      %p176 = scmp.ne.s32.totalorder %s161, %s175
      %p177 = scmp.eq.s32.totalorder %s25, 0
      %p178 = por %p176, %p177
      %s180 = sadd.s32 %s179, 1
      %p183 = scmp.eq.s32.totalorder %s19, 1
      %p184 = scmp.ne.s32.totalorder %s179, %s181
      %p185 = scmp.eq.s32.totalorder %s19, 0
      %p186 = por %p184, %p185
      %p187 = scmp.ne.s32.totalorder %s179, %s181
      %p188 = scmp.eq.s32.totalorder %s24, 1
      %p189 = por %p187, %p188
      %p190 = scmp.ne.s32.totalorder %s181, %s182
      %p191 = scmp.eq.s32.totalorder %s24, 0
      %p192 = por %p190, %p191
      %p193 = scmp.ne.s32.totalorder %s181, %s182
      %p194 = scmp.eq.s32.totalorder %s25, 1
      %p195 = por %p193, %p194
      %p197 = scmp.ne.s32.totalorder %s182, %s196
      %p198 = scmp.eq.s32.totalorder %s25, 0
      %p199 = por %p197, %p198
      %s201 = sadd.s32 %s200, 1
      %p204 = scmp.eq.s32.totalorder %s19, 1
      %p205 = scmp.ne.s32.totalorder %s200, %s202
      %p206 = scmp.eq.s32.totalorder %s19, 0
      %p207 = por %p205, %p206
      %p208 = scmp.ne.s32.totalorder %s200, %s202
      %p209 = scmp.eq.s32.totalorder %s24, 1
      %p210 = por %p208, %p209
      %p211 = scmp.ne.s32.totalorder %s202, %s203
      %p212 = scmp.eq.s32.totalorder %s24, 0
      %p213 = por %p211, %p212
      %p214 = scmp.ne.s32.totalorder %s202, %s203
      %p215 = scmp.eq.s32.totalorder %s25, 1
      %p216 = por %p214, %p215
      %p218 = scmp.ne.s32.totalorder %s203, %s217
      %p219 = scmp.eq.s32.totalorder %s25, 0
      %p220 = por %p218, %p219
      %s222 = sadd.s32 %s221, 1
      %p225 = scmp.eq.s32.totalorder %s19, 1
      %p226 = scmp.ne.s32.totalorder %s221, %s223
      %p227 = scmp.eq.s32.totalorder %s19, 0
      %p228 = por %p226, %p227
      %p229 = scmp.ne.s32.totalorder %s221, %s223
      %p230 = scmp.eq.s32.totalorder %s24, 1
      %p231 = por %p229, %p230
      %p232 = scmp.ne.s32.totalorder %s223, %s224
      %p233 = scmp.eq.s32.totalorder %s24, 0
      %p234 = por %p232, %p233
      %p235 = scmp.ne.s32.totalorder %s223, %s224
      %p236 = scmp.eq.s32.totalorder %s25, 1
      %p237 = por %p235, %p236
      %p239 = scmp.ne.s32.totalorder %s224, %s238
      %p240 = scmp.eq.s32.totalorder %s25, 0
      %p241 = por %p239, %p240
      %s242 = ssub.s32 %s19, %s26
      %p243 = scmp.eq.s32.totalorder %s242, 0
      %s245 = sadd.s32 %s244, 1
      %s246 = scalar_select %p243, %s244, %s245
      %p249 = pneg %p243
      %p250 = scmp.eq.s32.totalorder %s19, 1
      %p251 = por %p249, %p250
      %p252 = scmp.ne.s32.totalorder %s244, %s247
      %p253 = scmp.eq.s32.totalorder %s19, 0
      %p254 = por %p252, %p253
      %p255 = scmp.ne.s32.totalorder %s244, %s247
      %p256 = scmp.eq.s32.totalorder %s24, 1
      %p257 = por %p255, %p256
      %p258 = scmp.ne.s32.totalorder %s247, %s248
      %p259 = scmp.eq.s32.totalorder %s24, 0
      %p260 = por %p258, %p259
      %p261 = scmp.ne.s32.totalorder %s247, %s248
      %p262 = scmp.eq.s32.totalorder %s25, 1
      %p263 = por %p261, %p262
      %p265 = scmp.ne.s32.totalorder %s248, %s264
      %p266 = scmp.eq.s32.totalorder %s25, 0
      %p267 = por %p265, %p266
      %p268 = scmp.le.s32.totalorder 1, %s19
      %p269 = scmp.lt.s32.totalorder %s19, 3
      %p270 = pnand %p268, %p269
      %p271 = pneg %p270
      // Predicated region
      $region9: #{tpu_custom_call.1} parent=5 // pred_check
        _
      $region10: #{tpu_custom_call.1} parent=5 // pred_check_branch
        %273 = sbr.rel (%p270) target = $region12
      $region11: #{tpu_custom_call.1} parent=5 // pred_region
        %s274 = ssub.s32 %s19, 1
        // Predicated region
        $region13: #{tpu_custom_call.1} parent=11 // pred_check
          %p275 = pneg %p66
        $region14: #{tpu_custom_call.1} parent=11 // pred_check_branch
          %277 = sbr.rel (%p275) target = $region16
        $region15: #{tpu_custom_call.1} parent=11 // pred_region
          _
        $region16: #{tpu_custom_call.1} parent=11 // pred_fallthru
          _
        // Predicated region
        $region17: #{tpu_custom_call.1} parent=11 // pred_check
          %p278 = pneg %p87
        $region18: #{tpu_custom_call.1} parent=11 // pred_check_branch
          %280 = sbr.rel (%p278) target = $region20
        $region19: #{tpu_custom_call.1} parent=11 // pred_region
          _
        $region20: #{tpu_custom_call.1} parent=11 // pred_fallthru
          _
        // Predicated region
        $region21: #{tpu_custom_call.1} parent=11 // pred_check
          %p281 = pneg %p108
        $region22: #{tpu_custom_call.1} parent=11 // pred_check_branch
          %283 = sbr.rel (%p281) target = $region24
        $region23: #{tpu_custom_call.1} parent=11 // pred_region
          _
        $region24: #{tpu_custom_call.1} parent=11 // pred_fallthru
          _
        // Predicated region
        $region25: #{tpu_custom_call.1} parent=11 // pred_check
          %p284 = pneg %p129
        $region26: #{tpu_custom_call.1} parent=11 // pred_check_branch
          %286 = sbr.rel (%p284) target = $region28
        $region27: #{tpu_custom_call.1} parent=11 // pred_region
          _
        $region28: #{tpu_custom_call.1} parent=11 // pred_fallthru
          _
        // Predicated region
        $region29: #{tpu_custom_call.1} parent=11 // pred_check
          %p287 = pneg %p150
        $region30: #{tpu_custom_call.1} parent=11 // pred_check_branch
          %289 = sbr.rel (%p287) target = $region32
        $region31: #{tpu_custom_call.1} parent=11 // pred_region
          %s291 = ssub.s32 2048, 2048
          %292 = vsyncadd [#allocation3], %s291
          %s293 = sshll.u32 [#allocation2], 4
          %s294 = int_to_ptr.vmem [resolvable:$true] %s293
          %299 = dma.hbm_to_vmem [thread:$0]  %s5, 2048, %s294, [#allocation3], 64, 64, 4
        $region32: #{tpu_custom_call.1} parent=11 // pred_fallthru
          _
        // Predicated region
        $region33: #{tpu_custom_call.1} parent=11 // pred_check
          %p300 = pneg %p171
        $region34: #{tpu_custom_call.1} parent=11 // pred_check_branch
          %302 = sbr.rel (%p300) target = $region36
        $region35: #{tpu_custom_call.1} parent=11 // pred_region
          %s304 = ssub.s32 2048, 2048
          %305 = vsyncadd [#allocation5], %s304
          %s306 = sshll.u32 [#allocation4], 4
          %s307 = int_to_ptr.vmem [resolvable:$true] %s306
          %312 = dma.hbm_to_vmem [thread:$0]  %s6, 2048, %s307, [#allocation5], 128, 128, 8
        $region36: #{tpu_custom_call.1} parent=11 // pred_fallthru
          _
        // Predicated region
        $region37: #{tpu_custom_call.1} parent=11 // pred_check
          %p313 = pneg %p192
        $region38: #{tpu_custom_call.1} parent=11 // pred_check_branch
          %315 = sbr.rel (%p313) target = $region40
        $region39: #{tpu_custom_call.1} parent=11 // pred_region
          %s317 = ssub.s32 2048, 2048
          %318 = vsyncadd [#allocation5], %s317
          %s319 = sshll.u32 [#allocation6], 4
          %s320 = int_to_ptr.vmem [resolvable:$true] %s319
          %325 = dma.hbm_to_vmem [thread:$0]  %s7, 2048, %s320, [#allocation5], 64, 64, 4
        $region40: #{tpu_custom_call.1} parent=11 // pred_fallthru
          _
        // Predicated region
        $region41: #{tpu_custom_call.1} parent=11 // pred_check
          %p326 = pneg %p213
        $region42: #{tpu_custom_call.1} parent=11 // pred_check_branch
          %328 = sbr.rel (%p326) target = $region44
        $region43: #{tpu_custom_call.1} parent=11 // pred_region
          %s330 = ssub.s32 2048, 2048
          %331 = vsyncadd [#allocation8], %s330
          %s332 = sshll.u32 [#allocation7], 4
          %s333 = int_to_ptr.vmem [resolvable:$true] %s332
          %338 = dma.hbm_to_vmem [thread:$0]  %s8, 2048, %s333, [#allocation8], 128, 128, 8
        $region44: #{tpu_custom_call.1} parent=11 // pred_fallthru
          _
        // Predicated region
        $region45: #{tpu_custom_call.1} parent=11 // pred_check
          %p339 = pneg %p234
        $region46: #{tpu_custom_call.1} parent=11 // pred_check_branch
          %341 = sbr.rel (%p339) target = $region48
        $region47: #{tpu_custom_call.1} parent=11 // pred_region
          _
        $region48: #{tpu_custom_call.1} parent=11 // pred_fallthru
          _
      $region12: #{tpu_custom_call.1} parent=5 // pred_fallthru
        _
      %p342 = scmp.lt.s32.totalorder %s19, 2
      // Predicated region
      $region49: #{tpu_custom_call.1} parent=5 // pred_check
        %p343 = pneg %p342
      $region50: #{tpu_custom_call.1} parent=5 // pred_check_branch
        %345 = sbr.rel (%p343) target = $region52
      $region51: #{tpu_custom_call.1} parent=5 // pred_region
        // Predicated region
        $region53: #{tpu_custom_call.1} parent=51 // pred_check
          %p346 = pneg %p39
        $region54: #{tpu_custom_call.1} parent=51 // pred_check_branch
          %348 = sbr.rel (%p346) target = $region56
        $region55: #{tpu_custom_call.1} parent=51 // pred_region
          %s349 = smul.u32 16, %s19
          %p350 = scmp.lt.s32.totalorder %s349, 31
          %s351 = scalar_select %p350, %s349, 31
          %s352 = smul.addr %s351, 8
          %s353 = scalar_lea.vmem %s0, %s352
          %s354 = smul.u32 16, %s19
        $region56: #{tpu_custom_call.1} parent=51 // pred_fallthru
          _
      $region52: #{tpu_custom_call.1} parent=5 // pred_fallthru
        _
      %p355 = scmp.le.s32.totalorder 1, %s19
      %p356 = scmp.lt.s32.totalorder %s19, 3
      %p357 = pnand %p355, %p356
      %p358 = pneg %p357
      // Predicated region
      $region57: #{tpu_custom_call.1} parent=5 // pred_check
        _
      $region58: #{tpu_custom_call.1} parent=5 // pred_check_branch
        %360 = sbr.rel (%p357) target = $region60
      $region59: #{tpu_custom_call.1} parent=5 // pred_region
        %s361 = ssub.s32 %s19, 1
        // Predicated region
        $region61: #{tpu_custom_call.1} parent=59 // pred_check
          %p362 = pneg %p150
        $region62: #{tpu_custom_call.1} parent=59 // pred_check_branch
          %364 = sbr.rel (%p362) target = $region64
        $region63: #{tpu_custom_call.1} parent=59 // pred_region
          %365 = dma.done [#allocation3], 2048
        $region64: #{tpu_custom_call.1} parent=59 // pred_fallthru
          _
        // Predicated region
        $region65: #{tpu_custom_call.1} parent=59 // pred_check
          %p366 = pneg %p171
        $region66: #{tpu_custom_call.1} parent=59 // pred_check_branch
          %368 = sbr.rel (%p366) target = $region68
        $region67: #{tpu_custom_call.1} parent=59 // pred_region
          %369 = dma.done [#allocation5], 2048
        $region68: #{tpu_custom_call.1} parent=59 // pred_fallthru
          _
        // Predicated region
        $region69: #{tpu_custom_call.1} parent=59 // pred_check
          %p370 = pneg %p192
        $region70: #{tpu_custom_call.1} parent=59 // pred_check_branch
          %372 = sbr.rel (%p370) target = $region72
        $region71: #{tpu_custom_call.1} parent=59 // pred_region
          %373 = dma.done [#allocation5], 2048
        $region72: #{tpu_custom_call.1} parent=59 // pred_fallthru
          _
        // Predicated region
        $region73: #{tpu_custom_call.1} parent=59 // pred_check
          %p374 = pneg %p213
        $region74: #{tpu_custom_call.1} parent=59 // pred_check_branch
          %376 = sbr.rel (%p374) target = $region76
        $region75: #{tpu_custom_call.1} parent=59 // pred_region
          %377 = dma.done [#allocation8], 2048
        $region76: #{tpu_custom_call.1} parent=59 // pred_fallthru
          _
        %s378 = smul.u32 16, %s24
        %p379 = scmp.lt.s32.totalorder %s378, 31
        %s380 = scalar_select %p379, %s378, 31
        %s381 = smul.addr %s380, 8
        %s382 = scalar_lea.vmem %s0, %s381
        %p383 = pneg %p45
        %p384 = pneg %p42
        %p385 = pneg %p66
        %p386 = pneg %p63
        %p387 = pneg %p87
        %p388 = pneg %p84
        %p389 = pneg %p108
        %p390 = pneg %p105
        %p391 = pneg %p129
        %p392 = pneg %p126
        %p393 = pneg %p150
        %p394 = pneg %p147
        %p395 = pneg %p171
        %p396 = pneg %p168
        %p397 = pneg %p192
        %p398 = pneg %p189
        %p399 = pneg %p213
        %p400 = pneg %p210
        %p401 = pneg %p234
        %p402 = pneg %p231
        %p403 = pneg %p260
        %p404 = pneg %p257
        %s405 = smul.u32 16, %s24
        %p406 = scmp.lt.s32.totalorder %s405, 31
        %s407 = scalar_select %p406, %s405, 31
        %s408 = smul.addr %s407, 8
        %s409 = scalar_lea.vmem %s10, %s408
        %s410 = smul.u32 16, %s24
        %p411 = scmp.lt.s32.totalorder %s410, 31
        %s412 = scalar_select %p411, %s410, 31
        %s413 = smul.addr %s412, 8
        %s414 = scalar_lea.vmem %s0, %s413
        %s415 = smul.u32 16, %s24
        %s416 = smul.u32 16, %s24
        %p417 = scmp.lt.s32.totalorder %s416, 31
        %s418 = scalar_select %p417, %s416, 31
        %s419 = smul.addr %s418, 8
        %s420 = scalar_lea.vmem %s10, %s419
        %s421 = smul.u32 16, %s24
        %v423 = vld [vmem:[%s414] sm:$0xff]
        %v424 = vld [vmem:[%s414 + $0x8] sm:$0xff]
        %v425 = vld [vmem:[%s414 + $0x10] sm:$0xff]
        %v426 = vld [vmem:[%s414 + $0x18] sm:$0xff]
        %v427 = vld [vmem:[%s414 + $0x20] sm:$0xff]
        %v428 = vld [vmem:[%s414 + $0x28] sm:$0xff]
        %v429 = vld [vmem:[%s414 + $0x30] sm:$0xff]
        %v430 = vld [vmem:[%s414 + $0x38] sm:$0xff]
        %v431 = vld [vmem:[%s414 + $0x40] sm:$0xff]
        %v432 = vld [vmem:[%s414 + $0x48] sm:$0xff]
        %v433 = vld [vmem:[%s414 + $0x50] sm:$0xff]
        %v434 = vld [vmem:[%s414 + $0x58] sm:$0xff]
        %v435 = vld [vmem:[%s414 + $0x60] sm:$0xff]
        %v436 = vld [vmem:[%s414 + $0x68] sm:$0xff]
        %v437 = vld [vmem:[%s414 + $0x70] sm:$0xff]
        %v438 = vld [vmem:[%s414 + $0x78] sm:$0xff]
        %v439 = vpack.c.bf16 %v424, %v423
        %v440 = vpack.c.bf16 %v426, %v425
        %v441 = vpack.c.bf16 %v428, %v427
        %v442 = vpack.c.bf16 %v430, %v429
        %v443 = vpack.c.bf16 %v432, %v431
        %v444 = vpack.c.bf16 %v434, %v433
        %v445 = vpack.c.bf16 %v436, %v435
        %v446 = vpack.c.bf16 %v438, %v437
        %v447 = vld [vmem:[%s1] sm:$0xf]
        %v448 = vld [vmem:[%s1 + $0x4] sm:$0xf]
        %v451 = vunpack.c.l.b16 %v447
        %v452 = vunpack.c.l.b16 %v448
        %v453 = vpack.c.b16 %v452, %v451
        %vm455 = vcmask 130048
        %v457 = vsel %vm455, %v439, 0
        %v460 = vsel %vm455, %v440, 0
        %v463 = vsel %vm455, %v441, 0
        %v466 = vsel %vm455, %v442, 0
        %v469 = vsel %vm455, %v443, 0
        %v472 = vsel %vm455, %v444, 0
        %v475 = vsel %vm455, %v445, 0
        %v478 = vsel %vm455, %v446, 0
        %480 = vmatprep.subr.bf16.mxu0 0
        %481 = vmatpush1.bf16.msra.mxu0 0
        %482 = vmatprep.subr.bf16.mxu0 0
        %483 = vmatpush1.bf16.msra.mxu0 0
        %484 = vmatprep.subr.bf16.mxu0 0
        %485 = vmatpush1.bf16.msra.mxu0 0
        %486 = vmatprep.subr.bf16.mxu0 0
        %487 = vmatpush1.bf16.msra.mxu0 0
        %488 = vmatprep.subr.bf16.mxu0 0
        %489 = vmatpush1.bf16.msra.mxu0 0
        %490 = vmatprep.subr.bf16.mxu0 0
        %491 = vmatpush1.bf16.msra.mxu0 0
        %492 = vmatprep.subr.bf16.mxu0 0
        %493 = vmatpush1.bf16.msra.mxu0 0
        %494 = vmatprep.subr.bf16.mxu0 0
        %495 = vmatpush1.bf16.msra.mxu0 %v453
        %496 = vmatprep.subr.bf16.mxu0 0
        %497 = vmatpush2.bf16.msra.mxu0 0
        %498 = vmatprep.subr.bf16.mxu0 0
        %499 = vmatpush2.bf16.msra.mxu0 0
        %500 = vmatprep.subr.bf16.mxu0 0
        %501 = vmatpush2.bf16.msra.mxu0 0
        %502 = vmatprep.subr.bf16.mxu0 0
        %503 = vmatpush2.bf16.msra.mxu0 0
        %504 = vmatprep.subr.bf16.mxu0 0
        %505 = vmatpush2.bf16.msra.mxu0 0
        %506 = vmatprep.subr.bf16.mxu0 0
        %507 = vmatpush2.bf16.msra.mxu0 0
        %508 = vmatprep.subr.bf16.mxu0 0
        %509 = vmatpush2.bf16.msra.mxu0 0
        %510 = vmatprep.subr.bf16.mxu0 0
        %511 = vmatpush2.bf16.msra.mxu0 0
        %512 = vmatprep.mubr.bf16.mxu0 0
        %513 = vmatmul.mubr.bf16.gmra.mxu0 %v457
        %v514 = vpop.f32.mrf.mxu0
        %v515 = vadd.f32 0.0, %v514
        %v516 = vpop.f32.mrf.mxu0
        %v517 = vpop.f32.mrf.mxu0
        %v518 = vadd.f32 0.0, %v517
        %v519 = vpop.f32.mrf.mxu0
        %520 = vmatprep.mubr.bf16.mxu0 0
        %521 = vmatmul.mubr.bf16.gmra.mxu0 %v460
        %v522 = vpop.f32.mrf.mxu0
        %v523 = vadd.f32 0.0, %v522
        %v524 = vpop.f32.mrf.mxu0
        %v525 = vpop.f32.mrf.mxu0
        %v526 = vadd.f32 0.0, %v525
        %v527 = vpop.f32.mrf.mxu0
        %528 = vmatprep.mubr.bf16.mxu0 0
        %529 = vmatmul.mubr.bf16.gmra.mxu0 %v463
        %v530 = vpop.f32.mrf.mxu0
        %v531 = vadd.f32 0.0, %v530
        %v532 = vpop.f32.mrf.mxu0
        %v533 = vpop.f32.mrf.mxu0
        %v534 = vadd.f32 0.0, %v533
        %v535 = vpop.f32.mrf.mxu0
        %536 = vmatprep.mubr.bf16.mxu0 0
        %537 = vmatmul.mubr.bf16.gmra.mxu0 %v466
        %v538 = vpop.f32.mrf.mxu0
        %v539 = vadd.f32 0.0, %v538
        %v540 = vpop.f32.mrf.mxu0
        %v541 = vpop.f32.mrf.mxu0
        %v542 = vadd.f32 0.0, %v541
        %v543 = vpop.f32.mrf.mxu0
        %544 = vmatprep.mubr.bf16.mxu0 0
        %545 = vmatmul.mubr.bf16.gmra.mxu0 %v469
        %v546 = vpop.f32.mrf.mxu0
        %v547 = vadd.f32 0.0, %v546
        %v548 = vpop.f32.mrf.mxu0
        %v549 = vpop.f32.mrf.mxu0
        %v550 = vadd.f32 0.0, %v549
        %v551 = vpop.f32.mrf.mxu0
        %552 = vmatprep.mubr.bf16.mxu0 0
        %553 = vmatmul.mubr.bf16.gmra.mxu0 %v472
        %v554 = vpop.f32.mrf.mxu0
        %v555 = vadd.f32 0.0, %v554
        %v556 = vpop.f32.mrf.mxu0
        %v557 = vpop.f32.mrf.mxu0
        %v558 = vadd.f32 0.0, %v557
        %v559 = vpop.f32.mrf.mxu0
        %560 = vmatprep.mubr.bf16.mxu0 0
        %561 = vmatmul.mubr.bf16.gmra.mxu0 %v475
        %v562 = vpop.f32.mrf.mxu0
        %v563 = vadd.f32 0.0, %v562
        %v564 = vpop.f32.mrf.mxu0
        %v565 = vpop.f32.mrf.mxu0
        %v566 = vadd.f32 0.0, %v565
        %v567 = vpop.f32.mrf.mxu0
        %568 = vmatprep.mubr.bf16.mxu0 0
        %569 = vmatmul.mubr.bf16.gmra.mxu0 %v478
        %v570 = vpop.f32.mrf.mxu0
        %v571 = vadd.f32 0.0, %v570
        %v572 = vpop.f32.mrf.mxu0
        %v573 = vpop.f32.mrf.mxu0
        %v574 = vadd.f32 0.0, %v573
        %v575 = vpop.f32.mrf.mxu0
        %576 = vdwg.mxu0
        %vm577 = vcmp.gt.f32.partialorder %v515, 0.0
        %vm578 = vcmp.gt.f32.partialorder %v518, 0.0
        %vm579 = vcmp.gt.f32.partialorder %v523, 0.0
        %vm580 = vcmp.gt.f32.partialorder %v526, 0.0
        %vm581 = vcmp.gt.f32.partialorder %v531, 0.0
        %vm582 = vcmp.gt.f32.partialorder %v534, 0.0
        %vm583 = vcmp.gt.f32.partialorder %v539, 0.0
        %vm584 = vcmp.gt.f32.partialorder %v542, 0.0
        %vm585 = vcmp.gt.f32.partialorder %v547, 0.0
        %vm586 = vcmp.gt.f32.partialorder %v550, 0.0
        %vm587 = vcmp.gt.f32.partialorder %v555, 0.0
        %vm588 = vcmp.gt.f32.partialorder %v558, 0.0
        %vm589 = vcmp.gt.f32.partialorder %v563, 0.0
        %vm590 = vcmp.gt.f32.partialorder %v566, 0.0
        %vm591 = vcmp.gt.f32.partialorder %v571, 0.0
        %vm592 = vcmp.gt.f32.partialorder %v574, 0.0
        %v593 = vmul.f32 %v515, 0.2
        %v594 = vmul.f32 %v518, 0.2
        %v595 = vmul.f32 %v523, 0.2
        %v596 = vmul.f32 %v526, 0.2
        %v597 = vmul.f32 %v531, 0.2
        %v598 = vmul.f32 %v534, 0.2
        %v599 = vmul.f32 %v539, 0.2
        %v600 = vmul.f32 %v542, 0.2
        %v601 = vmul.f32 %v547, 0.2
        %v602 = vmul.f32 %v550, 0.2
        %v603 = vmul.f32 %v555, 0.2
        %v604 = vmul.f32 %v558, 0.2
        %v605 = vmul.f32 %v563, 0.2
        %v606 = vmul.f32 %v566, 0.2
        %v607 = vmul.f32 %v571, 0.2
        %v608 = vmul.f32 %v574, 0.2
        %v609 = vsel %vm577, %v515, %v593
        %v610 = vsel %vm578, %v518, %v594
        %v611 = vsel %vm579, %v523, %v595
        %v612 = vsel %vm580, %v526, %v596
        %v613 = vsel %vm581, %v531, %v597
        %v614 = vsel %vm582, %v534, %v598
        %v615 = vsel %vm583, %v539, %v599
        %v616 = vsel %vm584, %v542, %v600
        %v617 = vsel %vm585, %v547, %v601
        %v618 = vsel %vm586, %v550, %v602
        %v619 = vsel %vm587, %v555, %v603
        %v620 = vsel %vm588, %v558, %v604
        %v621 = vsel %vm589, %v563, %v605
        %v622 = vsel %vm590, %v566, %v606
        %v623 = vsel %vm591, %v571, %v607
        %v624 = vsel %vm592, %v574, %v608
        %v625 = vpack.c.bf16 %v610, %v609
        %v626 = vpack.c.bf16 %v612, %v611
        %v627 = vpack.c.bf16 %v614, %v613
        %v628 = vpack.c.bf16 %v616, %v615
        %v629 = vpack.c.bf16 %v618, %v617
        %v630 = vpack.c.bf16 %v620, %v619
        %v631 = vpack.c.bf16 %v622, %v621
        %v632 = vpack.c.bf16 %v624, %v623
        %v633 = vld [vmem:[%s2] sm:$0xff]
        %v634 = vld [vmem:[%s2 + $0x8] sm:$0xff]
        %v635 = vld [vmem:[%s2 + $0x10] sm:$0xff]
        %v636 = vld [vmem:[%s2 + $0x18] sm:$0xff]
        %v637 = vld [vmem:[%s2 + $0x20] sm:$0xff]
        %v638 = vld [vmem:[%s2 + $0x28] sm:$0xff]
        %v639 = vld [vmem:[%s2 + $0x30] sm:$0xff]
        %v640 = vld [vmem:[%s2 + $0x38] sm:$0xff]
        %v641 = vld [vmem:[%s2 + $0x40] sm:$0xff]
        %v642 = vld [vmem:[%s2 + $0x48] sm:$0xff]
        %v643 = vld [vmem:[%s2 + $0x50] sm:$0xff]
        %v644 = vld [vmem:[%s2 + $0x58] sm:$0xff]
        %v645 = vld [vmem:[%s2 + $0x60] sm:$0xff]
        %v646 = vld [vmem:[%s2 + $0x68] sm:$0xff]
        %v647 = vld [vmem:[%s2 + $0x70] sm:$0xff]
        %v648 = vld [vmem:[%s2 + $0x78] sm:$0xff]
        %v665 = vunpack.c.l.b16 %v633
        %v666 = vunpack.c.h.b16 %v633
        %v667 = vunpack.c.l.b16 %v634
        %v668 = vunpack.c.h.b16 %v634
        %v669 = vunpack.c.l.b16 %v635
        %v670 = vunpack.c.h.b16 %v635
        %v671 = vunpack.c.l.b16 %v636
        %v672 = vunpack.c.h.b16 %v636
        %v673 = vunpack.c.l.b16 %v637
        %v674 = vunpack.c.h.b16 %v637
        %v675 = vunpack.c.l.b16 %v638
        %v676 = vunpack.c.h.b16 %v638
        %v677 = vunpack.c.l.b16 %v639
        %v678 = vunpack.c.h.b16 %v639
        %v679 = vunpack.c.l.b16 %v640
        %v680 = vunpack.c.h.b16 %v640
        %v681 = vunpack.c.l.b16 %v641
        %v682 = vunpack.c.h.b16 %v641
        %v683 = vunpack.c.l.b16 %v642
        %v684 = vunpack.c.h.b16 %v642
        %v685 = vunpack.c.l.b16 %v643
        %v686 = vunpack.c.h.b16 %v643
        %v687 = vunpack.c.l.b16 %v644
        %v688 = vunpack.c.h.b16 %v644
        %v689 = vunpack.c.l.b16 %v645
        %v690 = vunpack.c.h.b16 %v645
        %v691 = vunpack.c.l.b16 %v646
        %v692 = vunpack.c.h.b16 %v646
        %v693 = vunpack.c.l.b16 %v647
        %v694 = vunpack.c.h.b16 %v647
        %v695 = vunpack.c.l.b16 %v648
        %v696 = vunpack.c.h.b16 %v648
        %v697 = vpack.c.b16 %v667, %v665
        %v698 = vpack.c.b16 %v668, %v666
        %v699 = vpack.c.b16 %v671, %v669
        %v700 = vpack.c.b16 %v672, %v670
        %v701 = vpack.c.b16 %v675, %v673
        %v702 = vpack.c.b16 %v676, %v674
        %v703 = vpack.c.b16 %v679, %v677
        %v704 = vpack.c.b16 %v680, %v678
        %v705 = vpack.c.b16 %v683, %v681
        %v706 = vpack.c.b16 %v684, %v682
        %v707 = vpack.c.b16 %v687, %v685
        %v708 = vpack.c.b16 %v688, %v686
        %v709 = vpack.c.b16 %v691, %v689
        %v710 = vpack.c.b16 %v692, %v690
        %v711 = vpack.c.b16 %v695, %v693
        %v712 = vpack.c.b16 %v696, %v694
        %729 = vmatprep.subr.bf16.mxu0 %v712
        %730 = vmatpush1.bf16.msra.mxu0 %v711
        %731 = vmatprep.subr.bf16.mxu0 %v710
        %732 = vmatpush1.bf16.msra.mxu0 %v709
        %733 = vmatprep.subr.bf16.mxu0 %v708
        %734 = vmatpush1.bf16.msra.mxu0 %v707
        %735 = vmatprep.subr.bf16.mxu0 %v706
        %736 = vmatpush1.bf16.msra.mxu0 %v705
        %737 = vmatprep.subr.bf16.mxu0 %v704
        %738 = vmatpush1.bf16.msra.mxu0 %v703
        %739 = vmatprep.subr.bf16.mxu0 %v702
        %740 = vmatpush1.bf16.msra.mxu0 %v701
        %741 = vmatprep.subr.bf16.mxu0 %v700
        %742 = vmatpush1.bf16.msra.mxu0 %v699
        %743 = vmatprep.subr.bf16.mxu0 %v698
        %744 = vmatpush1.bf16.msra.mxu0 %v697
        %745 = vmatprep.subr.bf16.mxu0 0
        %746 = vmatpush2.bf16.msra.mxu0 0
        %747 = vmatprep.subr.bf16.mxu0 0
        %748 = vmatpush2.bf16.msra.mxu0 0
        %749 = vmatprep.subr.bf16.mxu0 0
        %750 = vmatpush2.bf16.msra.mxu0 0
        %751 = vmatprep.subr.bf16.mxu0 0
        %752 = vmatpush2.bf16.msra.mxu0 0
        %753 = vmatprep.subr.bf16.mxu0 0
        %754 = vmatpush2.bf16.msra.mxu0 0
        %755 = vmatprep.subr.bf16.mxu0 0
        %756 = vmatpush2.bf16.msra.mxu0 0
        %757 = vmatprep.subr.bf16.mxu0 0
        %758 = vmatpush2.bf16.msra.mxu0 0
        %759 = vmatprep.subr.bf16.mxu0 0
        %760 = vmatpush2.bf16.msra.mxu0 0
        %761 = vmatprep.mubr.bf16.mxu0 0
        %762 = vmatmul.mubr.bf16.gmra.mxu0 %v625
        %v763 = vpop.f32.mrf.mxu0
        %v764 = vadd.f32 0.0, %v763
        %v765 = vpop.f32.mrf.mxu0
        %v766 = vadd.f32 0.0, %v765
        %v767 = vpop.f32.mrf.mxu0
        %v768 = vadd.f32 0.0, %v767
        %v769 = vpop.f32.mrf.mxu0
        %v770 = vadd.f32 0.0, %v769
        %771 = vmatprep.mubr.bf16.mxu0 0
        %772 = vmatmul.mubr.bf16.gmra.mxu0 %v626
        %v773 = vpop.f32.mrf.mxu0
        %v774 = vadd.f32 0.0, %v773
        %v775 = vpop.f32.mrf.mxu0
        %v776 = vadd.f32 0.0, %v775
        %v777 = vpop.f32.mrf.mxu0
        %v778 = vadd.f32 0.0, %v777
        %v779 = vpop.f32.mrf.mxu0
        %v780 = vadd.f32 0.0, %v779
        %781 = vmatprep.mubr.bf16.mxu0 0
        %782 = vmatmul.mubr.bf16.gmra.mxu0 %v627
        %v783 = vpop.f32.mrf.mxu0
        %v784 = vadd.f32 0.0, %v783
        %v785 = vpop.f32.mrf.mxu0
        %v786 = vadd.f32 0.0, %v785
        %v787 = vpop.f32.mrf.mxu0
        %v788 = vadd.f32 0.0, %v787
        %v789 = vpop.f32.mrf.mxu0
        %v790 = vadd.f32 0.0, %v789
        %791 = vmatprep.mubr.bf16.mxu0 0
        %792 = vmatmul.mubr.bf16.gmra.mxu0 %v628
        %v793 = vpop.f32.mrf.mxu0
        %v794 = vadd.f32 0.0, %v793
        %v795 = vpop.f32.mrf.mxu0
        %v796 = vadd.f32 0.0, %v795
        %v797 = vpop.f32.mrf.mxu0
        %v798 = vadd.f32 0.0, %v797
        %v799 = vpop.f32.mrf.mxu0
        %v800 = vadd.f32 0.0, %v799
        %801 = vmatprep.mubr.bf16.mxu0 0
        %802 = vmatmul.mubr.bf16.gmra.mxu0 %v629
        %v803 = vpop.f32.mrf.mxu0
        %v804 = vadd.f32 0.0, %v803
        %v805 = vpop.f32.mrf.mxu0
        %v806 = vadd.f32 0.0, %v805
        %v807 = vpop.f32.mrf.mxu0
        %v808 = vadd.f32 0.0, %v807
        %v809 = vpop.f32.mrf.mxu0
        %v810 = vadd.f32 0.0, %v809
        %811 = vmatprep.mubr.bf16.mxu0 0
        %812 = vmatmul.mubr.bf16.gmra.mxu0 %v630
        %v813 = vpop.f32.mrf.mxu0
        %v814 = vadd.f32 0.0, %v813
        %v815 = vpop.f32.mrf.mxu0
        %v816 = vadd.f32 0.0, %v815
        %v817 = vpop.f32.mrf.mxu0
        %v818 = vadd.f32 0.0, %v817
        %v819 = vpop.f32.mrf.mxu0
        %v820 = vadd.f32 0.0, %v819
        %821 = vmatprep.mubr.bf16.mxu0 0
        %822 = vmatmul.mubr.bf16.gmra.mxu0 %v631
        %v823 = vpop.f32.mrf.mxu0
        %v824 = vadd.f32 0.0, %v823
        %v825 = vpop.f32.mrf.mxu0
        %v826 = vadd.f32 0.0, %v825
        %v827 = vpop.f32.mrf.mxu0
        %v828 = vadd.f32 0.0, %v827
        %v829 = vpop.f32.mrf.mxu0
        %v830 = vadd.f32 0.0, %v829
        %831 = vmatprep.mubr.bf16.mxu0 0
        %832 = vmatmul.mubr.bf16.gmra.mxu0 %v632
        %v833 = vpop.f32.mrf.mxu0
        %v834 = vadd.f32 0.0, %v833
        %v835 = vpop.f32.mrf.mxu0
        %v836 = vadd.f32 0.0, %v835
        %v837 = vpop.f32.mrf.mxu0
        %v838 = vadd.f32 0.0, %v837
        %v839 = vpop.f32.mrf.mxu0
        %v840 = vadd.f32 0.0, %v839
        %841 = vdwg.mxu0
        %vm842 = vcmp.gt.f32.partialorder %v764, 0.0
        %vm843 = vcmp.gt.f32.partialorder %v766, 0.0
        %vm844 = vcmp.gt.f32.partialorder %v768, 0.0
        %vm845 = vcmp.gt.f32.partialorder %v770, 0.0
        %vm846 = vcmp.gt.f32.partialorder %v774, 0.0
        %vm847 = vcmp.gt.f32.partialorder %v776, 0.0
        %vm848 = vcmp.gt.f32.partialorder %v778, 0.0
        %vm849 = vcmp.gt.f32.partialorder %v780, 0.0
        %vm850 = vcmp.gt.f32.partialorder %v784, 0.0
        %vm851 = vcmp.gt.f32.partialorder %v786, 0.0
        %vm852 = vcmp.gt.f32.partialorder %v788, 0.0
        %vm853 = vcmp.gt.f32.partialorder %v790, 0.0
        %vm854 = vcmp.gt.f32.partialorder %v794, 0.0
        %vm855 = vcmp.gt.f32.partialorder %v796, 0.0
        %vm856 = vcmp.gt.f32.partialorder %v798, 0.0
        %vm857 = vcmp.gt.f32.partialorder %v800, 0.0
        %vm858 = vcmp.gt.f32.partialorder %v804, 0.0
        %vm859 = vcmp.gt.f32.partialorder %v806, 0.0
        %vm860 = vcmp.gt.f32.partialorder %v808, 0.0
        %vm861 = vcmp.gt.f32.partialorder %v810, 0.0
        %vm862 = vcmp.gt.f32.partialorder %v814, 0.0
        %vm863 = vcmp.gt.f32.partialorder %v816, 0.0
        %vm864 = vcmp.gt.f32.partialorder %v818, 0.0
        %vm865 = vcmp.gt.f32.partialorder %v820, 0.0
        %vm866 = vcmp.gt.f32.partialorder %v824, 0.0
        %vm867 = vcmp.gt.f32.partialorder %v826, 0.0
        %vm868 = vcmp.gt.f32.partialorder %v828, 0.0
        %vm869 = vcmp.gt.f32.partialorder %v830, 0.0
        %vm870 = vcmp.gt.f32.partialorder %v834, 0.0
        %vm871 = vcmp.gt.f32.partialorder %v836, 0.0
        %vm872 = vcmp.gt.f32.partialorder %v838, 0.0
        %vm873 = vcmp.gt.f32.partialorder %v840, 0.0
        %v874 = vmul.f32 %v764, 0.2
        %v875 = vmul.f32 %v766, 0.2
        %v876 = vmul.f32 %v768, 0.2
        %v877 = vmul.f32 %v770, 0.2
        %v878 = vmul.f32 %v774, 0.2
        %v879 = vmul.f32 %v776, 0.2
        %v880 = vmul.f32 %v778, 0.2
        %v881 = vmul.f32 %v780, 0.2
        %v882 = vmul.f32 %v784, 0.2
        %v883 = vmul.f32 %v786, 0.2
        %v884 = vmul.f32 %v788, 0.2
        %v885 = vmul.f32 %v790, 0.2
        %v886 = vmul.f32 %v794, 0.2
        %v887 = vmul.f32 %v796, 0.2
        %v888 = vmul.f32 %v798, 0.2
        %v889 = vmul.f32 %v800, 0.2
        %v890 = vmul.f32 %v804, 0.2
        %v891 = vmul.f32 %v806, 0.2
        %v892 = vmul.f32 %v808, 0.2
        %v893 = vmul.f32 %v810, 0.2
        %v894 = vmul.f32 %v814, 0.2
        %v895 = vmul.f32 %v816, 0.2
        %v896 = vmul.f32 %v818, 0.2
        %v897 = vmul.f32 %v820, 0.2
        %v898 = vmul.f32 %v824, 0.2
        %v899 = vmul.f32 %v826, 0.2
        %v900 = vmul.f32 %v828, 0.2
        %v901 = vmul.f32 %v830, 0.2
        %v902 = vmul.f32 %v834, 0.2
        %v903 = vmul.f32 %v836, 0.2
        %v904 = vmul.f32 %v838, 0.2
        %v905 = vmul.f32 %v840, 0.2
        %v906 = vsel %vm842, %v764, %v874
        %v907 = vsel %vm843, %v766, %v875
        %v908 = vsel %vm844, %v768, %v876
        %v909 = vsel %vm845, %v770, %v877
        %v910 = vsel %vm846, %v774, %v878
        %v911 = vsel %vm847, %v776, %v879
        %v912 = vsel %vm848, %v778, %v880
        %v913 = vsel %vm849, %v780, %v881
        %v914 = vsel %vm850, %v784, %v882
        %v915 = vsel %vm851, %v786, %v883
        %v916 = vsel %vm852, %v788, %v884
        %v917 = vsel %vm853, %v790, %v885
        %v918 = vsel %vm854, %v794, %v886
        %v919 = vsel %vm855, %v796, %v887
        %v920 = vsel %vm856, %v798, %v888
        %v921 = vsel %vm857, %v800, %v889
        %v922 = vsel %vm858, %v804, %v890
        %v923 = vsel %vm859, %v806, %v891
        %v924 = vsel %vm860, %v808, %v892
        %v925 = vsel %vm861, %v810, %v893
        %v926 = vsel %vm862, %v814, %v894
        %v927 = vsel %vm863, %v816, %v895
        %v928 = vsel %vm864, %v818, %v896
        %v929 = vsel %vm865, %v820, %v897
        %v930 = vsel %vm866, %v824, %v898
        %v931 = vsel %vm867, %v826, %v899
        %v932 = vsel %vm868, %v828, %v900
        %v933 = vsel %vm869, %v830, %v901
        %v934 = vsel %vm870, %v834, %v902
        %v935 = vsel %vm871, %v836, %v903
        %v936 = vsel %vm872, %v838, %v904
        %v937 = vsel %vm873, %v840, %v905
        %v938 = vpack.c.bf16 %v908, %v906
        %v939 = vpack.c.bf16 %v909, %v907
        %v940 = vpack.c.bf16 %v912, %v910
        %v941 = vpack.c.bf16 %v913, %v911
        %v942 = vpack.c.bf16 %v916, %v914
        %v943 = vpack.c.bf16 %v917, %v915
        %v944 = vpack.c.bf16 %v920, %v918
        %v945 = vpack.c.bf16 %v921, %v919
        %v946 = vpack.c.bf16 %v924, %v922
        %v947 = vpack.c.bf16 %v925, %v923
        %v948 = vpack.c.bf16 %v928, %v926
        %v949 = vpack.c.bf16 %v929, %v927
        %v950 = vpack.c.bf16 %v932, %v930
        %v951 = vpack.c.bf16 %v933, %v931
        %v952 = vpack.c.bf16 %v936, %v934
        %v953 = vpack.c.bf16 %v937, %v935
        %v954 = vld [vmem:[%s3] sm:$0xf]
        %v955 = vld [vmem:[%s3 + $0x4] sm:$0xf]
        %v956 = vld [vmem:[%s3 + $0x8] sm:$0xf]
        %v957 = vld [vmem:[%s3 + $0xc] sm:$0xf]
        %v958 = vld [vmem:[%s3 + $0x10] sm:$0xf]
        %v959 = vld [vmem:[%s3 + $0x14] sm:$0xf]
        %v960 = vld [vmem:[%s3 + $0x18] sm:$0xf]
        %v961 = vld [vmem:[%s3 + $0x1c] sm:$0xf]
        %v962 = vld [vmem:[%s3 + $0x20] sm:$0xf]
        %v963 = vld [vmem:[%s3 + $0x24] sm:$0xf]
        %v964 = vld [vmem:[%s3 + $0x28] sm:$0xf]
        %v965 = vld [vmem:[%s3 + $0x2c] sm:$0xf]
        %v966 = vld [vmem:[%s3 + $0x30] sm:$0xf]
        %v967 = vld [vmem:[%s3 + $0x34] sm:$0xf]
        %v968 = vld [vmem:[%s3 + $0x38] sm:$0xf]
        %v969 = vld [vmem:[%s3 + $0x3c] sm:$0xf]
        %v970 = vld [vmem:[%s3 + $0x40] sm:$0xf]
        %v971 = vld [vmem:[%s3 + $0x44] sm:$0xf]
        %v972 = vld [vmem:[%s3 + $0x48] sm:$0xf]
        %v973 = vld [vmem:[%s3 + $0x4c] sm:$0xf]
        %v974 = vld [vmem:[%s3 + $0x50] sm:$0xf]
        %v975 = vld [vmem:[%s3 + $0x54] sm:$0xf]
        %v976 = vld [vmem:[%s3 + $0x58] sm:$0xf]
        %v977 = vld [vmem:[%s3 + $0x5c] sm:$0xf]
        %v978 = vld [vmem:[%s3 + $0x60] sm:$0xf]
        %v979 = vld [vmem:[%s3 + $0x64] sm:$0xf]
        %v980 = vld [vmem:[%s3 + $0x68] sm:$0xf]
        %v981 = vld [vmem:[%s3 + $0x6c] sm:$0xf]
        %v982 = vld [vmem:[%s3 + $0x70] sm:$0xf]
        %v983 = vld [vmem:[%s3 + $0x74] sm:$0xf]
        %v984 = vld [vmem:[%s3 + $0x78] sm:$0xf]
        %v985 = vld [vmem:[%s3 + $0x7c] sm:$0xf]
        %v1018 = vunpack.c.l.b16 %v954
        %v1019 = vunpack.c.l.b16 %v955
        %v1020 = vunpack.c.l.b16 %v956
        %v1021 = vunpack.c.l.b16 %v957
        %v1022 = vunpack.c.l.b16 %v958
        %v1023 = vunpack.c.l.b16 %v959
        %v1024 = vunpack.c.l.b16 %v960
        %v1025 = vunpack.c.l.b16 %v961
        %v1026 = vunpack.c.l.b16 %v962
        %v1027 = vunpack.c.l.b16 %v963
        %v1028 = vunpack.c.l.b16 %v964
        %v1029 = vunpack.c.l.b16 %v965
        %v1030 = vunpack.c.l.b16 %v966
        %v1031 = vunpack.c.l.b16 %v967
        %v1032 = vunpack.c.l.b16 %v968
        %v1033 = vunpack.c.l.b16 %v969
        %v1034 = vunpack.c.l.b16 %v970
        %v1035 = vunpack.c.l.b16 %v971
        %v1036 = vunpack.c.l.b16 %v972
        %v1037 = vunpack.c.l.b16 %v973
        %v1038 = vunpack.c.l.b16 %v974
        %v1039 = vunpack.c.l.b16 %v975
        %v1040 = vunpack.c.l.b16 %v976
        %v1041 = vunpack.c.l.b16 %v977
        %v1042 = vunpack.c.l.b16 %v978
        %v1043 = vunpack.c.l.b16 %v979
        %v1044 = vunpack.c.l.b16 %v980
        %v1045 = vunpack.c.l.b16 %v981
        %v1046 = vunpack.c.l.b16 %v982
        %v1047 = vunpack.c.l.b16 %v983
        %v1048 = vunpack.c.l.b16 %v984
        %v1049 = vunpack.c.l.b16 %v985
        %v1050 = vpack.c.b16 %v1019, %v1018
        %v1051 = vpack.c.b16 %v1021, %v1020
        %v1052 = vpack.c.b16 %v1023, %v1022
        %v1053 = vpack.c.b16 %v1025, %v1024
        %v1054 = vpack.c.b16 %v1027, %v1026
        %v1055 = vpack.c.b16 %v1029, %v1028
        %v1056 = vpack.c.b16 %v1031, %v1030
        %v1057 = vpack.c.b16 %v1033, %v1032
        %v1058 = vpack.c.b16 %v1035, %v1034
        %v1059 = vpack.c.b16 %v1037, %v1036
        %v1060 = vpack.c.b16 %v1039, %v1038
        %v1061 = vpack.c.b16 %v1041, %v1040
        %v1062 = vpack.c.b16 %v1043, %v1042
        %v1063 = vpack.c.b16 %v1045, %v1044
        %v1064 = vpack.c.b16 %v1047, %v1046
        %v1065 = vpack.c.b16 %v1049, %v1048
        %1082 = vmatprep.subr.bf16.mxu0 0
        %1083 = vmatpush1.bf16.msra.mxu0 %v1057
        %1084 = vmatprep.subr.bf16.mxu0 0
        %1085 = vmatpush1.bf16.msra.mxu0 %v1056
        %1086 = vmatprep.subr.bf16.mxu0 0
        %1087 = vmatpush1.bf16.msra.mxu0 %v1055
        %1088 = vmatprep.subr.bf16.mxu0 0
        %1089 = vmatpush1.bf16.msra.mxu0 %v1054
        %1090 = vmatprep.subr.bf16.mxu0 0
        %1091 = vmatpush1.bf16.msra.mxu0 %v1053
        %1092 = vmatprep.subr.bf16.mxu0 0
        %1093 = vmatpush1.bf16.msra.mxu0 %v1052
        %1094 = vmatprep.subr.bf16.mxu0 0
        %1095 = vmatpush1.bf16.msra.mxu0 %v1051
        %1096 = vmatprep.subr.bf16.mxu0 0
        %1097 = vmatpush1.bf16.msra.mxu0 %v1050
        %1098 = vmatprep.subr.bf16.mxu0 0
        %1099 = vmatpush2.bf16.msra.mxu0 %v1065
        %1100 = vmatprep.subr.bf16.mxu0 0
        %1101 = vmatpush2.bf16.msra.mxu0 %v1064
        %1102 = vmatprep.subr.bf16.mxu0 0
        %1103 = vmatpush2.bf16.msra.mxu0 %v1063
        %1104 = vmatprep.subr.bf16.mxu0 0
        %1105 = vmatpush2.bf16.msra.mxu0 %v1062
        %1106 = vmatprep.subr.bf16.mxu0 0
        %1107 = vmatpush2.bf16.msra.mxu0 %v1061
        %1108 = vmatprep.subr.bf16.mxu0 0
        %1109 = vmatpush2.bf16.msra.mxu0 %v1060
        %1110 = vmatprep.subr.bf16.mxu0 0
        %1111 = vmatpush2.bf16.msra.mxu0 %v1059
        %1112 = vmatprep.subr.bf16.mxu0 0
        %1113 = vmatpush2.bf16.msra.mxu0 %v1058
        %1114 = vmatprep.mubr.bf16.mxu0 %v939
        %1115 = vmatmul.mubr.bf16.gmra.mxu0 %v938
        %v1116 = vpop.f32.mrf.mxu0
        %v1117 = vadd.f32 0.0, %v1116
        %v1118 = vpop.f32.mrf.mxu0
        %v1119 = vpop.f32.mrf.mxu0
        %v1120 = vadd.f32 0.0, %v1119
        %v1121 = vpop.f32.mrf.mxu0
        %1122 = vmatprep.mubr.bf16.mxu0 %v941
        %1123 = vmatmul.mubr.bf16.gmra.mxu0 %v940
        %v1124 = vpop.f32.mrf.mxu0
        %v1125 = vadd.f32 0.0, %v1124
        %v1126 = vpop.f32.mrf.mxu0
        %v1127 = vpop.f32.mrf.mxu0
        %v1128 = vadd.f32 0.0, %v1127
        %v1129 = vpop.f32.mrf.mxu0
        %1130 = vmatprep.mubr.bf16.mxu0 %v943
        %1131 = vmatmul.mubr.bf16.gmra.mxu0 %v942
        %v1132 = vpop.f32.mrf.mxu0
        %v1133 = vadd.f32 0.0, %v1132
        %v1134 = vpop.f32.mrf.mxu0
        %v1135 = vpop.f32.mrf.mxu0
        %v1136 = vadd.f32 0.0, %v1135
        %v1137 = vpop.f32.mrf.mxu0
        %1138 = vmatprep.mubr.bf16.mxu0 %v945
        %1139 = vmatmul.mubr.bf16.gmra.mxu0 %v944
        %v1140 = vpop.f32.mrf.mxu0
        %v1141 = vadd.f32 0.0, %v1140
        %v1142 = vpop.f32.mrf.mxu0
        %v1143 = vpop.f32.mrf.mxu0
        %v1144 = vadd.f32 0.0, %v1143
        %v1145 = vpop.f32.mrf.mxu0
        %1146 = vmatprep.mubr.bf16.mxu0 %v947
        %1147 = vmatmul.mubr.bf16.gmra.mxu0 %v946
        %v1148 = vpop.f32.mrf.mxu0
        %v1149 = vadd.f32 0.0, %v1148
        %v1150 = vpop.f32.mrf.mxu0
        %v1151 = vpop.f32.mrf.mxu0
        %v1152 = vadd.f32 0.0, %v1151
        %v1153 = vpop.f32.mrf.mxu0
        %1154 = vmatprep.mubr.bf16.mxu0 %v949
        %1155 = vmatmul.mubr.bf16.gmra.mxu0 %v948
        %v1156 = vpop.f32.mrf.mxu0
        %v1157 = vadd.f32 0.0, %v1156
        %v1158 = vpop.f32.mrf.mxu0
        %v1159 = vpop.f32.mrf.mxu0
        %v1160 = vadd.f32 0.0, %v1159
        %v1161 = vpop.f32.mrf.mxu0
        %1162 = vmatprep.mubr.bf16.mxu0 %v951
        %1163 = vmatmul.mubr.bf16.gmra.mxu0 %v950
        %v1164 = vpop.f32.mrf.mxu0
        %v1165 = vadd.f32 0.0, %v1164
        %v1166 = vpop.f32.mrf.mxu0
        %v1167 = vpop.f32.mrf.mxu0
        %v1168 = vadd.f32 0.0, %v1167
        %v1169 = vpop.f32.mrf.mxu0
        %1170 = vmatprep.mubr.bf16.mxu0 %v953
        %1171 = vmatmul.mubr.bf16.gmra.mxu0 %v952
        %v1172 = vpop.f32.mrf.mxu0
        %v1173 = vadd.f32 0.0, %v1172
        %v1174 = vpop.f32.mrf.mxu0
        %v1175 = vpop.f32.mrf.mxu0
        %v1176 = vadd.f32 0.0, %v1175
        %v1177 = vpop.f32.mrf.mxu0
        %1178 = vdwg.mxu0
        %vm1179 = vcmp.gt.f32.partialorder %v1117, 0.0
        %vm1180 = vcmp.gt.f32.partialorder %v1120, 0.0
        %vm1181 = vcmp.gt.f32.partialorder %v1125, 0.0
        %vm1182 = vcmp.gt.f32.partialorder %v1128, 0.0
        %vm1183 = vcmp.gt.f32.partialorder %v1133, 0.0
        %vm1184 = vcmp.gt.f32.partialorder %v1136, 0.0
        %vm1185 = vcmp.gt.f32.partialorder %v1141, 0.0
        %vm1186 = vcmp.gt.f32.partialorder %v1144, 0.0
        %vm1187 = vcmp.gt.f32.partialorder %v1149, 0.0
        %vm1188 = vcmp.gt.f32.partialorder %v1152, 0.0
        %vm1189 = vcmp.gt.f32.partialorder %v1157, 0.0
        %vm1190 = vcmp.gt.f32.partialorder %v1160, 0.0
        %vm1191 = vcmp.gt.f32.partialorder %v1165, 0.0
        %vm1192 = vcmp.gt.f32.partialorder %v1168, 0.0
        %vm1193 = vcmp.gt.f32.partialorder %v1173, 0.0
        %vm1194 = vcmp.gt.f32.partialorder %v1176, 0.0
        %v1195 = vmul.f32 %v1117, 0.2
        %v1196 = vmul.f32 %v1120, 0.2
        %v1197 = vmul.f32 %v1125, 0.2
        %v1198 = vmul.f32 %v1128, 0.2
        %v1199 = vmul.f32 %v1133, 0.2
        %v1200 = vmul.f32 %v1136, 0.2
        %v1201 = vmul.f32 %v1141, 0.2
        %v1202 = vmul.f32 %v1144, 0.2
        %v1203 = vmul.f32 %v1149, 0.2
        %v1204 = vmul.f32 %v1152, 0.2
        %v1205 = vmul.f32 %v1157, 0.2
        %v1206 = vmul.f32 %v1160, 0.2
        %v1207 = vmul.f32 %v1165, 0.2
        %v1208 = vmul.f32 %v1168, 0.2
        %v1209 = vmul.f32 %v1173, 0.2
        %v1210 = vmul.f32 %v1176, 0.2
        %v1211 = vsel %vm1179, %v1117, %v1195
        %v1212 = vsel %vm1180, %v1120, %v1196
        %v1213 = vsel %vm1181, %v1125, %v1197
        %v1214 = vsel %vm1182, %v1128, %v1198
        %v1215 = vsel %vm1183, %v1133, %v1199
        %v1216 = vsel %vm1184, %v1136, %v1200
        %v1217 = vsel %vm1185, %v1141, %v1201
        %v1218 = vsel %vm1186, %v1144, %v1202
        %v1219 = vsel %vm1187, %v1149, %v1203
        %v1220 = vsel %vm1188, %v1152, %v1204
        %v1221 = vsel %vm1189, %v1157, %v1205
        %v1222 = vsel %vm1190, %v1160, %v1206
        %v1223 = vsel %vm1191, %v1165, %v1207
        %v1224 = vsel %vm1192, %v1168, %v1208
        %v1225 = vsel %vm1193, %v1173, %v1209
        %v1226 = vsel %vm1194, %v1176, %v1210
        %v1227 = vpack.c.bf16 %v1212, %v1211
        %v1228 = vpack.c.bf16 %v1214, %v1213
        %v1229 = vpack.c.bf16 %v1216, %v1215
        %v1230 = vpack.c.bf16 %v1218, %v1217
        %v1231 = vpack.c.bf16 %v1220, %v1219
        %v1232 = vpack.c.bf16 %v1222, %v1221
        %v1233 = vpack.c.bf16 %v1224, %v1223
        %v1234 = vpack.c.bf16 %v1226, %v1225
        %v1235 = vld [vmem:[%s4] sm:$0xff]
        %v1236 = vld [vmem:[%s4 + $0x8] sm:$0xff]
        %v1237 = vld [vmem:[%s4 + $0x10] sm:$0xff]
        %v1238 = vld [vmem:[%s4 + $0x18] sm:$0xff]
        %v1239 = vld [vmem:[%s4 + $0x20] sm:$0xff]
        %v1240 = vld [vmem:[%s4 + $0x28] sm:$0xff]
        %v1241 = vld [vmem:[%s4 + $0x30] sm:$0xff]
        %v1242 = vld [vmem:[%s4 + $0x38] sm:$0xff]
        %v1243 = vld [vmem:[%s4 + $0x40] sm:$0xff]
        %v1244 = vld [vmem:[%s4 + $0x48] sm:$0xff]
        %v1245 = vld [vmem:[%s4 + $0x50] sm:$0xff]
        %v1246 = vld [vmem:[%s4 + $0x58] sm:$0xff]
        %v1247 = vld [vmem:[%s4 + $0x60] sm:$0xff]
        %v1248 = vld [vmem:[%s4 + $0x68] sm:$0xff]
        %v1249 = vld [vmem:[%s4 + $0x70] sm:$0xff]
        %v1250 = vld [vmem:[%s4 + $0x78] sm:$0xff]
        %v1267 = vunpack.c.l.b16 %v1235
        %v1268 = vunpack.c.h.b16 %v1235
        %v1269 = vunpack.c.l.b16 %v1236
        %v1270 = vunpack.c.h.b16 %v1236
        %v1271 = vunpack.c.l.b16 %v1237
        %v1272 = vunpack.c.h.b16 %v1237
        %v1273 = vunpack.c.l.b16 %v1238
        %v1274 = vunpack.c.h.b16 %v1238
        %v1275 = vunpack.c.l.b16 %v1239
        %v1276 = vunpack.c.h.b16 %v1239
        %v1277 = vunpack.c.l.b16 %v1240
        %v1278 = vunpack.c.h.b16 %v1240
        %v1279 = vunpack.c.l.b16 %v1241
        %v1280 = vunpack.c.h.b16 %v1241
        %v1281 = vunpack.c.l.b16 %v1242
        %v1282 = vunpack.c.h.b16 %v1242
        %v1283 = vunpack.c.l.b16 %v1243
        %v1284 = vunpack.c.h.b16 %v1243
        %v1285 = vunpack.c.l.b16 %v1244
        %v1286 = vunpack.c.h.b16 %v1244
        %v1287 = vunpack.c.l.b16 %v1245
        %v1288 = vunpack.c.h.b16 %v1245
        %v1289 = vunpack.c.l.b16 %v1246
        %v1290 = vunpack.c.h.b16 %v1246
        %v1291 = vunpack.c.l.b16 %v1247
        %v1292 = vunpack.c.h.b16 %v1247
        %v1293 = vunpack.c.l.b16 %v1248
        %v1294 = vunpack.c.h.b16 %v1248
        %v1295 = vunpack.c.l.b16 %v1249
        %v1296 = vunpack.c.h.b16 %v1249
        %v1297 = vunpack.c.l.b16 %v1250
        %v1298 = vunpack.c.h.b16 %v1250
        %v1299 = vpack.c.b16 %v1269, %v1267
        %v1300 = vpack.c.b16 %v1270, %v1268
        %v1301 = vpack.c.b16 %v1273, %v1271
        %v1302 = vpack.c.b16 %v1274, %v1272
        %v1303 = vpack.c.b16 %v1277, %v1275
        %v1304 = vpack.c.b16 %v1278, %v1276
        %v1305 = vpack.c.b16 %v1281, %v1279
        %v1306 = vpack.c.b16 %v1282, %v1280
        %v1307 = vpack.c.b16 %v1285, %v1283
        %v1308 = vpack.c.b16 %v1286, %v1284
        %v1309 = vpack.c.b16 %v1289, %v1287
        %v1310 = vpack.c.b16 %v1290, %v1288
        %v1311 = vpack.c.b16 %v1293, %v1291
        %v1312 = vpack.c.b16 %v1294, %v1292
        %v1313 = vpack.c.b16 %v1297, %v1295
        %v1314 = vpack.c.b16 %v1298, %v1296
        %1331 = vmatprep.subr.bf16.mxu0 %v1314
        %1332 = vmatpush1.bf16.msra.mxu0 %v1313
        %1333 = vmatprep.subr.bf16.mxu0 %v1312
        %1334 = vmatpush1.bf16.msra.mxu0 %v1311
        %1335 = vmatprep.subr.bf16.mxu0 %v1310
        %1336 = vmatpush1.bf16.msra.mxu0 %v1309
        %1337 = vmatprep.subr.bf16.mxu0 %v1308
        %1338 = vmatpush1.bf16.msra.mxu0 %v1307
        %1339 = vmatprep.subr.bf16.mxu0 %v1306
        %1340 = vmatpush1.bf16.msra.mxu0 %v1305
        %1341 = vmatprep.subr.bf16.mxu0 %v1304
        %1342 = vmatpush1.bf16.msra.mxu0 %v1303
        %1343 = vmatprep.subr.bf16.mxu0 %v1302
        %1344 = vmatpush1.bf16.msra.mxu0 %v1301
        %1345 = vmatprep.subr.bf16.mxu0 %v1300
        %1346 = vmatpush1.bf16.msra.mxu0 %v1299
        %1347 = vmatprep.subr.bf16.mxu0 0
        %1348 = vmatpush2.bf16.msra.mxu0 0
        %1349 = vmatprep.subr.bf16.mxu0 0
        %1350 = vmatpush2.bf16.msra.mxu0 0
        %1351 = vmatprep.subr.bf16.mxu0 0
        %1352 = vmatpush2.bf16.msra.mxu0 0
        %1353 = vmatprep.subr.bf16.mxu0 0
        %1354 = vmatpush2.bf16.msra.mxu0 0
        %1355 = vmatprep.subr.bf16.mxu0 0
        %1356 = vmatpush2.bf16.msra.mxu0 0
        %1357 = vmatprep.subr.bf16.mxu0 0
        %1358 = vmatpush2.bf16.msra.mxu0 0
        %1359 = vmatprep.subr.bf16.mxu0 0
        %1360 = vmatpush2.bf16.msra.mxu0 0
        %1361 = vmatprep.subr.bf16.mxu0 0
        %1362 = vmatpush2.bf16.msra.mxu0 0
        %1363 = vmatprep.mubr.bf16.mxu0 0
        %1364 = vmatmul.mubr.bf16.gmra.mxu0 %v1227
        %v1365 = vpop.f32.mrf.mxu0
        %v1366 = vadd.f32 0.0, %v1365
        %v1367 = vpop.f32.mrf.mxu0
        %v1368 = vadd.f32 0.0, %v1367
        %v1369 = vpop.f32.mrf.mxu0
        %v1370 = vadd.f32 0.0, %v1369
        %v1371 = vpop.f32.mrf.mxu0
        %v1372 = vadd.f32 0.0, %v1371
        %1373 = vmatprep.mubr.bf16.mxu0 0
        %1374 = vmatmul.mubr.bf16.gmra.mxu0 %v1228
        %v1375 = vpop.f32.mrf.mxu0
        %v1376 = vadd.f32 0.0, %v1375
        %v1377 = vpop.f32.mrf.mxu0
        %v1378 = vadd.f32 0.0, %v1377
        %v1379 = vpop.f32.mrf.mxu0
        %v1380 = vadd.f32 0.0, %v1379
        %v1381 = vpop.f32.mrf.mxu0
        %v1382 = vadd.f32 0.0, %v1381
        %1383 = vmatprep.mubr.bf16.mxu0 0
        %1384 = vmatmul.mubr.bf16.gmra.mxu0 %v1229
        %v1385 = vpop.f32.mrf.mxu0
        %v1386 = vadd.f32 0.0, %v1385
        %v1387 = vpop.f32.mrf.mxu0
        %v1388 = vadd.f32 0.0, %v1387
        %v1389 = vpop.f32.mrf.mxu0
        %v1390 = vadd.f32 0.0, %v1389
        %v1391 = vpop.f32.mrf.mxu0
        %v1392 = vadd.f32 0.0, %v1391
        %1393 = vmatprep.mubr.bf16.mxu0 0
        %1394 = vmatmul.mubr.bf16.gmra.mxu0 %v1230
        %v1395 = vpop.f32.mrf.mxu0
        %v1396 = vadd.f32 0.0, %v1395
        %v1397 = vpop.f32.mrf.mxu0
        %v1398 = vadd.f32 0.0, %v1397
        %v1399 = vpop.f32.mrf.mxu0
        %v1400 = vadd.f32 0.0, %v1399
        %v1401 = vpop.f32.mrf.mxu0
        %v1402 = vadd.f32 0.0, %v1401
        %1403 = vmatprep.mubr.bf16.mxu0 0
        %1404 = vmatmul.mubr.bf16.gmra.mxu0 %v1231
        %v1405 = vpop.f32.mrf.mxu0
        %v1406 = vadd.f32 0.0, %v1405
        %v1407 = vpop.f32.mrf.mxu0
        %v1408 = vadd.f32 0.0, %v1407
        %v1409 = vpop.f32.mrf.mxu0
        %v1410 = vadd.f32 0.0, %v1409
        %v1411 = vpop.f32.mrf.mxu0
        %v1412 = vadd.f32 0.0, %v1411
        %1413 = vmatprep.mubr.bf16.mxu0 0
        %1414 = vmatmul.mubr.bf16.gmra.mxu0 %v1232
        %v1415 = vpop.f32.mrf.mxu0
        %v1416 = vadd.f32 0.0, %v1415
        %v1417 = vpop.f32.mrf.mxu0
        %v1418 = vadd.f32 0.0, %v1417
        %v1419 = vpop.f32.mrf.mxu0
        %v1420 = vadd.f32 0.0, %v1419
        %v1421 = vpop.f32.mrf.mxu0
        %v1422 = vadd.f32 0.0, %v1421
        %1423 = vmatprep.mubr.bf16.mxu0 0
        %1424 = vmatmul.mubr.bf16.gmra.mxu0 %v1233
        %v1425 = vpop.f32.mrf.mxu0
        %v1426 = vadd.f32 0.0, %v1425
        %v1427 = vpop.f32.mrf.mxu0
        %v1428 = vadd.f32 0.0, %v1427
        %v1429 = vpop.f32.mrf.mxu0
        %v1430 = vadd.f32 0.0, %v1429
        %v1431 = vpop.f32.mrf.mxu0
        %v1432 = vadd.f32 0.0, %v1431
        %1433 = vmatprep.mubr.bf16.mxu0 0
        %1434 = vmatmul.mubr.bf16.gmra.mxu0 %v1234
        %v1435 = vpop.f32.mrf.mxu0
        %v1436 = vadd.f32 0.0, %v1435
        %v1437 = vpop.f32.mrf.mxu0
        %v1438 = vadd.f32 0.0, %v1437
        %v1439 = vpop.f32.mrf.mxu0
        %v1440 = vadd.f32 0.0, %v1439
        %v1441 = vpop.f32.mrf.mxu0
        %v1442 = vadd.f32 0.0, %v1441
        %1443 = vdwg.mxu0
        %vm1444 = vcmp.gt.f32.partialorder %v1366, 0.0
        %vm1445 = vcmp.gt.f32.partialorder %v1368, 0.0
        %vm1446 = vcmp.gt.f32.partialorder %v1370, 0.0
        %vm1447 = vcmp.gt.f32.partialorder %v1372, 0.0
        %vm1448 = vcmp.gt.f32.partialorder %v1376, 0.0
        %vm1449 = vcmp.gt.f32.partialorder %v1378, 0.0
        %vm1450 = vcmp.gt.f32.partialorder %v1380, 0.0
        %vm1451 = vcmp.gt.f32.partialorder %v1382, 0.0
        %vm1452 = vcmp.gt.f32.partialorder %v1386, 0.0
        %vm1453 = vcmp.gt.f32.partialorder %v1388, 0.0
        %vm1454 = vcmp.gt.f32.partialorder %v1390, 0.0
        %vm1455 = vcmp.gt.f32.partialorder %v1392, 0.0
        %vm1456 = vcmp.gt.f32.partialorder %v1396, 0.0
        %vm1457 = vcmp.gt.f32.partialorder %v1398, 0.0
        %vm1458 = vcmp.gt.f32.partialorder %v1400, 0.0
        %vm1459 = vcmp.gt.f32.partialorder %v1402, 0.0
        %vm1460 = vcmp.gt.f32.partialorder %v1406, 0.0
        %vm1461 = vcmp.gt.f32.partialorder %v1408, 0.0
        %vm1462 = vcmp.gt.f32.partialorder %v1410, 0.0
        %vm1463 = vcmp.gt.f32.partialorder %v1412, 0.0
        %vm1464 = vcmp.gt.f32.partialorder %v1416, 0.0
        %vm1465 = vcmp.gt.f32.partialorder %v1418, 0.0
        %vm1466 = vcmp.gt.f32.partialorder %v1420, 0.0
        %vm1467 = vcmp.gt.f32.partialorder %v1422, 0.0
        %vm1468 = vcmp.gt.f32.partialorder %v1426, 0.0
        %vm1469 = vcmp.gt.f32.partialorder %v1428, 0.0
        %vm1470 = vcmp.gt.f32.partialorder %v1430, 0.0
        %vm1471 = vcmp.gt.f32.partialorder %v1432, 0.0
        %vm1472 = vcmp.gt.f32.partialorder %v1436, 0.0
        %vm1473 = vcmp.gt.f32.partialorder %v1438, 0.0
        %vm1474 = vcmp.gt.f32.partialorder %v1440, 0.0
        %vm1475 = vcmp.gt.f32.partialorder %v1442, 0.0
        %v1476 = vmul.f32 %v1366, 0.2
        %v1477 = vmul.f32 %v1368, 0.2
        %v1478 = vmul.f32 %v1370, 0.2
        %v1479 = vmul.f32 %v1372, 0.2
        %v1480 = vmul.f32 %v1376, 0.2
        %v1481 = vmul.f32 %v1378, 0.2
        %v1482 = vmul.f32 %v1380, 0.2
        %v1483 = vmul.f32 %v1382, 0.2
        %v1484 = vmul.f32 %v1386, 0.2
        %v1485 = vmul.f32 %v1388, 0.2
        %v1486 = vmul.f32 %v1390, 0.2
        %v1487 = vmul.f32 %v1392, 0.2
        %v1488 = vmul.f32 %v1396, 0.2
        %v1489 = vmul.f32 %v1398, 0.2
        %v1490 = vmul.f32 %v1400, 0.2
        %v1491 = vmul.f32 %v1402, 0.2
        %v1492 = vmul.f32 %v1406, 0.2
        %v1493 = vmul.f32 %v1408, 0.2
        %v1494 = vmul.f32 %v1410, 0.2
        %v1495 = vmul.f32 %v1412, 0.2
        %v1496 = vmul.f32 %v1416, 0.2
        %v1497 = vmul.f32 %v1418, 0.2
        %v1498 = vmul.f32 %v1420, 0.2
        %v1499 = vmul.f32 %v1422, 0.2
        %v1500 = vmul.f32 %v1426, 0.2
        %v1501 = vmul.f32 %v1428, 0.2
        %v1502 = vmul.f32 %v1430, 0.2
        %v1503 = vmul.f32 %v1432, 0.2
        %v1504 = vmul.f32 %v1436, 0.2
        %v1505 = vmul.f32 %v1438, 0.2
        %v1506 = vmul.f32 %v1440, 0.2
        %v1507 = vmul.f32 %v1442, 0.2
        %v1508 = vsel %vm1444, %v1366, %v1476
        %v1509 = vsel %vm1445, %v1368, %v1477
        %v1510 = vsel %vm1446, %v1370, %v1478
        %v1511 = vsel %vm1447, %v1372, %v1479
        %v1512 = vsel %vm1448, %v1376, %v1480
        %v1513 = vsel %vm1449, %v1378, %v1481
        %v1514 = vsel %vm1450, %v1380, %v1482
        %v1515 = vsel %vm1451, %v1382, %v1483
        %v1516 = vsel %vm1452, %v1386, %v1484
        %v1517 = vsel %vm1453, %v1388, %v1485
        %v1518 = vsel %vm1454, %v1390, %v1486
        %v1519 = vsel %vm1455, %v1392, %v1487
        %v1520 = vsel %vm1456, %v1396, %v1488
        %v1521 = vsel %vm1457, %v1398, %v1489
        %v1522 = vsel %vm1458, %v1400, %v1490
        %v1523 = vsel %vm1459, %v1402, %v1491
        %v1524 = vsel %vm1460, %v1406, %v1492
        %v1525 = vsel %vm1461, %v1408, %v1493
        %v1526 = vsel %vm1462, %v1410, %v1494
        %v1527 = vsel %vm1463, %v1412, %v1495
        %v1528 = vsel %vm1464, %v1416, %v1496
        %v1529 = vsel %vm1465, %v1418, %v1497
        %v1530 = vsel %vm1466, %v1420, %v1498
        %v1531 = vsel %vm1467, %v1422, %v1499
        %v1532 = vsel %vm1468, %v1426, %v1500
        %v1533 = vsel %vm1469, %v1428, %v1501
        %v1534 = vsel %vm1470, %v1430, %v1502
        %v1535 = vsel %vm1471, %v1432, %v1503
        %v1536 = vsel %vm1472, %v1436, %v1504
        %v1537 = vsel %vm1473, %v1438, %v1505
        %v1538 = vsel %vm1474, %v1440, %v1506
        %v1539 = vsel %vm1475, %v1442, %v1507
        %v1540 = vpack.c.bf16 %v1510, %v1508
        %v1541 = vpack.c.bf16 %v1511, %v1509
        %v1542 = vpack.c.bf16 %v1514, %v1512
        %v1543 = vpack.c.bf16 %v1515, %v1513
        %v1544 = vpack.c.bf16 %v1518, %v1516
        %v1545 = vpack.c.bf16 %v1519, %v1517
        %v1546 = vpack.c.bf16 %v1522, %v1520
        %v1547 = vpack.c.bf16 %v1523, %v1521
        %v1548 = vpack.c.bf16 %v1526, %v1524
        %v1549 = vpack.c.bf16 %v1527, %v1525
        %v1550 = vpack.c.bf16 %v1530, %v1528
        %v1551 = vpack.c.bf16 %v1531, %v1529
        %v1552 = vpack.c.bf16 %v1534, %v1532
        %v1553 = vpack.c.bf16 %v1535, %v1533
        %v1554 = vpack.c.bf16 %v1538, %v1536
        %v1555 = vpack.c.bf16 %v1539, %v1537
        %v1556 = vld [vmem:[#allocation2] sm:$0xf]
        %v1557 = vld [vmem:[#allocation2 + $0x4] sm:$0xf]
        %v1558 = vld [vmem:[#allocation2 + $0x8] sm:$0xf]
        %v1559 = vld [vmem:[#allocation2 + $0xc] sm:$0xf]
        %v1560 = vld [vmem:[#allocation2 + $0x10] sm:$0xf]
        %v1561 = vld [vmem:[#allocation2 + $0x14] sm:$0xf]
        %v1562 = vld [vmem:[#allocation2 + $0x18] sm:$0xf]
        %v1563 = vld [vmem:[#allocation2 + $0x1c] sm:$0xf]
        %v1564 = vld [vmem:[#allocation2 + $0x20] sm:$0xf]
        %v1565 = vld [vmem:[#allocation2 + $0x24] sm:$0xf]
        %v1566 = vld [vmem:[#allocation2 + $0x28] sm:$0xf]
        %v1567 = vld [vmem:[#allocation2 + $0x2c] sm:$0xf]
        %v1568 = vld [vmem:[#allocation2 + $0x30] sm:$0xf]
        %v1569 = vld [vmem:[#allocation2 + $0x34] sm:$0xf]
        %v1570 = vld [vmem:[#allocation2 + $0x38] sm:$0xf]
        %v1571 = vld [vmem:[#allocation2 + $0x3c] sm:$0xf]
        %v1572 = vld [vmem:[#allocation2 + $0x40] sm:$0xf]
        %v1573 = vld [vmem:[#allocation2 + $0x44] sm:$0xf]
        %v1574 = vld [vmem:[#allocation2 + $0x48] sm:$0xf]
        %v1575 = vld [vmem:[#allocation2 + $0x4c] sm:$0xf]
        %v1576 = vld [vmem:[#allocation2 + $0x50] sm:$0xf]
        %v1577 = vld [vmem:[#allocation2 + $0x54] sm:$0xf]
        %v1578 = vld [vmem:[#allocation2 + $0x58] sm:$0xf]
        %v1579 = vld [vmem:[#allocation2 + $0x5c] sm:$0xf]
        %v1580 = vld [vmem:[#allocation2 + $0x60] sm:$0xf]
        %v1581 = vld [vmem:[#allocation2 + $0x64] sm:$0xf]
        %v1582 = vld [vmem:[#allocation2 + $0x68] sm:$0xf]
        %v1583 = vld [vmem:[#allocation2 + $0x6c] sm:$0xf]
        %v1584 = vld [vmem:[#allocation2 + $0x70] sm:$0xf]
        %v1585 = vld [vmem:[#allocation2 + $0x74] sm:$0xf]
        %v1586 = vld [vmem:[#allocation2 + $0x78] sm:$0xf]
        %v1587 = vld [vmem:[#allocation2 + $0x7c] sm:$0xf]
        %v1620 = vunpack.c.l.b16 %v1556
        %v1621 = vunpack.c.l.b16 %v1557
        %v1622 = vunpack.c.l.b16 %v1558
        %v1623 = vunpack.c.l.b16 %v1559
        %v1624 = vunpack.c.l.b16 %v1560
        %v1625 = vunpack.c.l.b16 %v1561
        %v1626 = vunpack.c.l.b16 %v1562
        %v1627 = vunpack.c.l.b16 %v1563
        %v1628 = vunpack.c.l.b16 %v1564
        %v1629 = vunpack.c.l.b16 %v1565
        %v1630 = vunpack.c.l.b16 %v1566
        %v1631 = vunpack.c.l.b16 %v1567
        %v1632 = vunpack.c.l.b16 %v1568
        %v1633 = vunpack.c.l.b16 %v1569
        %v1634 = vunpack.c.l.b16 %v1570
        %v1635 = vunpack.c.l.b16 %v1571
        %v1636 = vunpack.c.l.b16 %v1572
        %v1637 = vunpack.c.l.b16 %v1573
        %v1638 = vunpack.c.l.b16 %v1574
        %v1639 = vunpack.c.l.b16 %v1575
        %v1640 = vunpack.c.l.b16 %v1576
        %v1641 = vunpack.c.l.b16 %v1577
        %v1642 = vunpack.c.l.b16 %v1578
        %v1643 = vunpack.c.l.b16 %v1579
        %v1644 = vunpack.c.l.b16 %v1580
        %v1645 = vunpack.c.l.b16 %v1581
        %v1646 = vunpack.c.l.b16 %v1582
        %v1647 = vunpack.c.l.b16 %v1583
        %v1648 = vunpack.c.l.b16 %v1584
        %v1649 = vunpack.c.l.b16 %v1585
        %v1650 = vunpack.c.l.b16 %v1586
        %v1651 = vunpack.c.l.b16 %v1587
        %v1652 = vpack.c.b16 %v1621, %v1620
        %v1653 = vpack.c.b16 %v1623, %v1622
        %v1654 = vpack.c.b16 %v1625, %v1624
        %v1655 = vpack.c.b16 %v1627, %v1626
        %v1656 = vpack.c.b16 %v1629, %v1628
        %v1657 = vpack.c.b16 %v1631, %v1630
        %v1658 = vpack.c.b16 %v1633, %v1632
        %v1659 = vpack.c.b16 %v1635, %v1634
        %v1660 = vpack.c.b16 %v1637, %v1636
        %v1661 = vpack.c.b16 %v1639, %v1638
        %v1662 = vpack.c.b16 %v1641, %v1640
        %v1663 = vpack.c.b16 %v1643, %v1642
        %v1664 = vpack.c.b16 %v1645, %v1644
        %v1665 = vpack.c.b16 %v1647, %v1646
        %v1666 = vpack.c.b16 %v1649, %v1648
        %v1667 = vpack.c.b16 %v1651, %v1650
        %1684 = vmatprep.subr.bf16.mxu0 0
        %1685 = vmatpush1.bf16.msra.mxu0 %v1659
        %1686 = vmatprep.subr.bf16.mxu0 0
        %1687 = vmatpush1.bf16.msra.mxu0 %v1658
        %1688 = vmatprep.subr.bf16.mxu0 0
        %1689 = vmatpush1.bf16.msra.mxu0 %v1657
        %1690 = vmatprep.subr.bf16.mxu0 0
        %1691 = vmatpush1.bf16.msra.mxu0 %v1656
        %1692 = vmatprep.subr.bf16.mxu0 0
        %1693 = vmatpush1.bf16.msra.mxu0 %v1655
        %1694 = vmatprep.subr.bf16.mxu0 0
        %1695 = vmatpush1.bf16.msra.mxu0 %v1654
        %1696 = vmatprep.subr.bf16.mxu0 0
        %1697 = vmatpush1.bf16.msra.mxu0 %v1653
        %1698 = vmatprep.subr.bf16.mxu0 0
        %1699 = vmatpush1.bf16.msra.mxu0 %v1652
        %1700 = vmatprep.subr.bf16.mxu0 0
        %1701 = vmatpush2.bf16.msra.mxu0 %v1667
        %1702 = vmatprep.subr.bf16.mxu0 0
        %1703 = vmatpush2.bf16.msra.mxu0 %v1666
        %1704 = vmatprep.subr.bf16.mxu0 0
        %1705 = vmatpush2.bf16.msra.mxu0 %v1665
        %1706 = vmatprep.subr.bf16.mxu0 0
        %1707 = vmatpush2.bf16.msra.mxu0 %v1664
        %1708 = vmatprep.subr.bf16.mxu0 0
        %1709 = vmatpush2.bf16.msra.mxu0 %v1663
        %1710 = vmatprep.subr.bf16.mxu0 0
        %1711 = vmatpush2.bf16.msra.mxu0 %v1662
        %1712 = vmatprep.subr.bf16.mxu0 0
        %1713 = vmatpush2.bf16.msra.mxu0 %v1661
        %1714 = vmatprep.subr.bf16.mxu0 0
        %1715 = vmatpush2.bf16.msra.mxu0 %v1660
        %1716 = vmatprep.mubr.bf16.mxu0 %v1541
        %1717 = vmatmul.mubr.bf16.gmra.mxu0 %v1540
        %v1718 = vpop.f32.mrf.mxu0
        %v1719 = vadd.f32 0.0, %v1718
        %v1720 = vpop.f32.mrf.mxu0
        %v1721 = vpop.f32.mrf.mxu0
        %v1722 = vadd.f32 0.0, %v1721
        %v1723 = vpop.f32.mrf.mxu0
        %1724 = vmatprep.mubr.bf16.mxu0 %v1543
        %1725 = vmatmul.mubr.bf16.gmra.mxu0 %v1542
        %v1726 = vpop.f32.mrf.mxu0
        %v1727 = vadd.f32 0.0, %v1726
        %v1728 = vpop.f32.mrf.mxu0
        %v1729 = vpop.f32.mrf.mxu0
        %v1730 = vadd.f32 0.0, %v1729
        %v1731 = vpop.f32.mrf.mxu0
        %1732 = vmatprep.mubr.bf16.mxu0 %v1545
        %1733 = vmatmul.mubr.bf16.gmra.mxu0 %v1544
        %v1734 = vpop.f32.mrf.mxu0
        %v1735 = vadd.f32 0.0, %v1734
        %v1736 = vpop.f32.mrf.mxu0
        %v1737 = vpop.f32.mrf.mxu0
        %v1738 = vadd.f32 0.0, %v1737
        %v1739 = vpop.f32.mrf.mxu0
        %1740 = vmatprep.mubr.bf16.mxu0 %v1547
        %1741 = vmatmul.mubr.bf16.gmra.mxu0 %v1546
        %v1742 = vpop.f32.mrf.mxu0
        %v1743 = vadd.f32 0.0, %v1742
        %v1744 = vpop.f32.mrf.mxu0
        %v1745 = vpop.f32.mrf.mxu0
        %v1746 = vadd.f32 0.0, %v1745
        %v1747 = vpop.f32.mrf.mxu0
        %1748 = vmatprep.mubr.bf16.mxu0 %v1549
        %1749 = vmatmul.mubr.bf16.gmra.mxu0 %v1548
        %v1750 = vpop.f32.mrf.mxu0
        %v1751 = vadd.f32 0.0, %v1750
        %v1752 = vpop.f32.mrf.mxu0
        %v1753 = vpop.f32.mrf.mxu0
        %v1754 = vadd.f32 0.0, %v1753
        %v1755 = vpop.f32.mrf.mxu0
        %1756 = vmatprep.mubr.bf16.mxu0 %v1551
        %1757 = vmatmul.mubr.bf16.gmra.mxu0 %v1550
        %v1758 = vpop.f32.mrf.mxu0
        %v1759 = vadd.f32 0.0, %v1758
        %v1760 = vpop.f32.mrf.mxu0
        %v1761 = vpop.f32.mrf.mxu0
        %v1762 = vadd.f32 0.0, %v1761
        %v1763 = vpop.f32.mrf.mxu0
        %1764 = vmatprep.mubr.bf16.mxu0 %v1553
        %1765 = vmatmul.mubr.bf16.gmra.mxu0 %v1552
        %v1766 = vpop.f32.mrf.mxu0
        %v1767 = vadd.f32 0.0, %v1766
        %v1768 = vpop.f32.mrf.mxu0
        %v1769 = vpop.f32.mrf.mxu0
        %v1770 = vadd.f32 0.0, %v1769
        %v1771 = vpop.f32.mrf.mxu0
        %1772 = vmatprep.mubr.bf16.mxu0 %v1555
        %1773 = vmatmul.mubr.bf16.gmra.mxu0 %v1554
        %v1774 = vpop.f32.mrf.mxu0
        %v1775 = vadd.f32 0.0, %v1774
        %v1776 = vpop.f32.mrf.mxu0
        %v1777 = vpop.f32.mrf.mxu0
        %v1778 = vadd.f32 0.0, %v1777
        %v1779 = vpop.f32.mrf.mxu0
        %1780 = vdwg.mxu0
        %vm1781 = vcmp.gt.f32.partialorder %v1719, 0.0
        %vm1782 = vcmp.gt.f32.partialorder %v1722, 0.0
        %vm1783 = vcmp.gt.f32.partialorder %v1727, 0.0
        %vm1784 = vcmp.gt.f32.partialorder %v1730, 0.0
        %vm1785 = vcmp.gt.f32.partialorder %v1735, 0.0
        %vm1786 = vcmp.gt.f32.partialorder %v1738, 0.0
        %vm1787 = vcmp.gt.f32.partialorder %v1743, 0.0
        %vm1788 = vcmp.gt.f32.partialorder %v1746, 0.0
        %vm1789 = vcmp.gt.f32.partialorder %v1751, 0.0
        %vm1790 = vcmp.gt.f32.partialorder %v1754, 0.0
        %vm1791 = vcmp.gt.f32.partialorder %v1759, 0.0
        %vm1792 = vcmp.gt.f32.partialorder %v1762, 0.0
        %vm1793 = vcmp.gt.f32.partialorder %v1767, 0.0
        %vm1794 = vcmp.gt.f32.partialorder %v1770, 0.0
        %vm1795 = vcmp.gt.f32.partialorder %v1775, 0.0
        %vm1796 = vcmp.gt.f32.partialorder %v1778, 0.0
        %v1797 = vmul.f32 %v1719, 0.2
        %v1798 = vmul.f32 %v1722, 0.2
        %v1799 = vmul.f32 %v1727, 0.2
        %v1800 = vmul.f32 %v1730, 0.2
        %v1801 = vmul.f32 %v1735, 0.2
        %v1802 = vmul.f32 %v1738, 0.2
        %v1803 = vmul.f32 %v1743, 0.2
        %v1804 = vmul.f32 %v1746, 0.2
        %v1805 = vmul.f32 %v1751, 0.2
        %v1806 = vmul.f32 %v1754, 0.2
        %v1807 = vmul.f32 %v1759, 0.2
        %v1808 = vmul.f32 %v1762, 0.2
        %v1809 = vmul.f32 %v1767, 0.2
        %v1810 = vmul.f32 %v1770, 0.2
        %v1811 = vmul.f32 %v1775, 0.2
        %v1812 = vmul.f32 %v1778, 0.2
        %v1813 = vsel %vm1781, %v1719, %v1797
        %v1814 = vsel %vm1782, %v1722, %v1798
        %v1815 = vsel %vm1783, %v1727, %v1799
        %v1816 = vsel %vm1784, %v1730, %v1800
        %v1817 = vsel %vm1785, %v1735, %v1801
        %v1818 = vsel %vm1786, %v1738, %v1802
        %v1819 = vsel %vm1787, %v1743, %v1803
        %v1820 = vsel %vm1788, %v1746, %v1804
        %v1821 = vsel %vm1789, %v1751, %v1805
        %v1822 = vsel %vm1790, %v1754, %v1806
        %v1823 = vsel %vm1791, %v1759, %v1807
        %v1824 = vsel %vm1792, %v1762, %v1808
        %v1825 = vsel %vm1793, %v1767, %v1809
        %v1826 = vsel %vm1794, %v1770, %v1810
        %v1827 = vsel %vm1795, %v1775, %v1811
        %v1828 = vsel %vm1796, %v1778, %v1812
        %v1829 = vpack.c.bf16 %v1814, %v1813
        %v1830 = vpack.c.bf16 %v1816, %v1815
        %v1831 = vpack.c.bf16 %v1818, %v1817
        %v1832 = vpack.c.bf16 %v1820, %v1819
        %v1833 = vpack.c.bf16 %v1822, %v1821
        %v1834 = vpack.c.bf16 %v1824, %v1823
        %v1835 = vpack.c.bf16 %v1826, %v1825
        %v1836 = vpack.c.bf16 %v1828, %v1827
        %v1837 = vld [vmem:[#allocation4] sm:$0xff]
        %v1838 = vld [vmem:[#allocation4 + $0x8] sm:$0xff]
        %v1839 = vld [vmem:[#allocation4 + $0x10] sm:$0xff]
        %v1840 = vld [vmem:[#allocation4 + $0x18] sm:$0xff]
        %v1841 = vld [vmem:[#allocation4 + $0x20] sm:$0xff]
        %v1842 = vld [vmem:[#allocation4 + $0x28] sm:$0xff]
        %v1843 = vld [vmem:[#allocation4 + $0x30] sm:$0xff]
        %v1844 = vld [vmem:[#allocation4 + $0x38] sm:$0xff]
        %v1845 = vld [vmem:[#allocation4 + $0x40] sm:$0xff]
        %v1846 = vld [vmem:[#allocation4 + $0x48] sm:$0xff]
        %v1847 = vld [vmem:[#allocation4 + $0x50] sm:$0xff]
        %v1848 = vld [vmem:[#allocation4 + $0x58] sm:$0xff]
        %v1849 = vld [vmem:[#allocation4 + $0x60] sm:$0xff]
        %v1850 = vld [vmem:[#allocation4 + $0x68] sm:$0xff]
        %v1851 = vld [vmem:[#allocation4 + $0x70] sm:$0xff]
        %v1852 = vld [vmem:[#allocation4 + $0x78] sm:$0xff]
        %v1869 = vunpack.c.l.b16 %v1837
        %v1870 = vunpack.c.h.b16 %v1837
        %v1871 = vunpack.c.l.b16 %v1838
        %v1872 = vunpack.c.h.b16 %v1838
        %v1873 = vunpack.c.l.b16 %v1839
        %v1874 = vunpack.c.h.b16 %v1839
        %v1875 = vunpack.c.l.b16 %v1840
        %v1876 = vunpack.c.h.b16 %v1840
        %v1877 = vunpack.c.l.b16 %v1841
        %v1878 = vunpack.c.h.b16 %v1841
        %v1879 = vunpack.c.l.b16 %v1842
        %v1880 = vunpack.c.h.b16 %v1842
        %v1881 = vunpack.c.l.b16 %v1843
        %v1882 = vunpack.c.h.b16 %v1843
        %v1883 = vunpack.c.l.b16 %v1844
        %v1884 = vunpack.c.h.b16 %v1844
        %v1885 = vunpack.c.l.b16 %v1845
        %v1886 = vunpack.c.h.b16 %v1845
        %v1887 = vunpack.c.l.b16 %v1846
        %v1888 = vunpack.c.h.b16 %v1846
        %v1889 = vunpack.c.l.b16 %v1847
        %v1890 = vunpack.c.h.b16 %v1847
        %v1891 = vunpack.c.l.b16 %v1848
        %v1892 = vunpack.c.h.b16 %v1848
        %v1893 = vunpack.c.l.b16 %v1849
        %v1894 = vunpack.c.h.b16 %v1849
        %v1895 = vunpack.c.l.b16 %v1850
        %v1896 = vunpack.c.h.b16 %v1850
        %v1897 = vunpack.c.l.b16 %v1851
        %v1898 = vunpack.c.h.b16 %v1851
        %v1899 = vunpack.c.l.b16 %v1852
        %v1900 = vunpack.c.h.b16 %v1852
        %v1901 = vpack.c.b16 %v1871, %v1869
        %v1902 = vpack.c.b16 %v1872, %v1870
        %v1903 = vpack.c.b16 %v1875, %v1873
        %v1904 = vpack.c.b16 %v1876, %v1874
        %v1905 = vpack.c.b16 %v1879, %v1877
        %v1906 = vpack.c.b16 %v1880, %v1878
        %v1907 = vpack.c.b16 %v1883, %v1881
        %v1908 = vpack.c.b16 %v1884, %v1882
        %v1909 = vpack.c.b16 %v1887, %v1885
        %v1910 = vpack.c.b16 %v1888, %v1886
        %v1911 = vpack.c.b16 %v1891, %v1889
        %v1912 = vpack.c.b16 %v1892, %v1890
        %v1913 = vpack.c.b16 %v1895, %v1893
        %v1914 = vpack.c.b16 %v1896, %v1894
        %v1915 = vpack.c.b16 %v1899, %v1897
        %v1916 = vpack.c.b16 %v1900, %v1898
        %1933 = vmatprep.subr.bf16.mxu0 %v1916
        %1934 = vmatpush1.bf16.msra.mxu0 %v1915
        %1935 = vmatprep.subr.bf16.mxu0 %v1914
        %1936 = vmatpush1.bf16.msra.mxu0 %v1913
        %1937 = vmatprep.subr.bf16.mxu0 %v1912
        %1938 = vmatpush1.bf16.msra.mxu0 %v1911
        %1939 = vmatprep.subr.bf16.mxu0 %v1910
        %1940 = vmatpush1.bf16.msra.mxu0 %v1909
        %1941 = vmatprep.subr.bf16.mxu0 %v1908
        %1942 = vmatpush1.bf16.msra.mxu0 %v1907
        %1943 = vmatprep.subr.bf16.mxu0 %v1906
        %1944 = vmatpush1.bf16.msra.mxu0 %v1905
        %1945 = vmatprep.subr.bf16.mxu0 %v1904
        %1946 = vmatpush1.bf16.msra.mxu0 %v1903
        %1947 = vmatprep.subr.bf16.mxu0 %v1902
        %1948 = vmatpush1.bf16.msra.mxu0 %v1901
        %1949 = vmatprep.subr.bf16.mxu0 0
        %1950 = vmatpush2.bf16.msra.mxu0 0
        %1951 = vmatprep.subr.bf16.mxu0 0
        %1952 = vmatpush2.bf16.msra.mxu0 0
        %1953 = vmatprep.subr.bf16.mxu0 0
        %1954 = vmatpush2.bf16.msra.mxu0 0
        %1955 = vmatprep.subr.bf16.mxu0 0
        %1956 = vmatpush2.bf16.msra.mxu0 0
        %1957 = vmatprep.subr.bf16.mxu0 0
        %1958 = vmatpush2.bf16.msra.mxu0 0
        %1959 = vmatprep.subr.bf16.mxu0 0
        %1960 = vmatpush2.bf16.msra.mxu0 0
        %1961 = vmatprep.subr.bf16.mxu0 0
        %1962 = vmatpush2.bf16.msra.mxu0 0
        %1963 = vmatprep.subr.bf16.mxu0 0
        %1964 = vmatpush2.bf16.msra.mxu0 0
        %1965 = vmatprep.mubr.bf16.mxu0 0
        %1966 = vmatmul.mubr.bf16.gmra.mxu0 %v1829
        %v1967 = vpop.f32.mrf.mxu0
        %v1968 = vadd.f32 0.0, %v1967
        %v1969 = vpop.f32.mrf.mxu0
        %v1970 = vadd.f32 0.0, %v1969
        %v1971 = vpop.f32.mrf.mxu0
        %v1972 = vadd.f32 0.0, %v1971
        %v1973 = vpop.f32.mrf.mxu0
        %v1974 = vadd.f32 0.0, %v1973
        %1975 = vmatprep.mubr.bf16.mxu0 0
        %1976 = vmatmul.mubr.bf16.gmra.mxu0 %v1830
        %v1977 = vpop.f32.mrf.mxu0
        %v1978 = vadd.f32 0.0, %v1977
        %v1979 = vpop.f32.mrf.mxu0
        %v1980 = vadd.f32 0.0, %v1979
        %v1981 = vpop.f32.mrf.mxu0
        %v1982 = vadd.f32 0.0, %v1981
        %v1983 = vpop.f32.mrf.mxu0
        %v1984 = vadd.f32 0.0, %v1983
        %1985 = vmatprep.mubr.bf16.mxu0 0
        %1986 = vmatmul.mubr.bf16.gmra.mxu0 %v1831
        %v1987 = vpop.f32.mrf.mxu0
        %v1988 = vadd.f32 0.0, %v1987
        %v1989 = vpop.f32.mrf.mxu0
        %v1990 = vadd.f32 0.0, %v1989
        %v1991 = vpop.f32.mrf.mxu0
        %v1992 = vadd.f32 0.0, %v1991
        %v1993 = vpop.f32.mrf.mxu0
        %v1994 = vadd.f32 0.0, %v1993
        %1995 = vmatprep.mubr.bf16.mxu0 0
        %1996 = vmatmul.mubr.bf16.gmra.mxu0 %v1832
        %v1997 = vpop.f32.mrf.mxu0
        %v1998 = vadd.f32 0.0, %v1997
        %v1999 = vpop.f32.mrf.mxu0
        %v2000 = vadd.f32 0.0, %v1999
        %v2001 = vpop.f32.mrf.mxu0
        %v2002 = vadd.f32 0.0, %v2001
        %v2003 = vpop.f32.mrf.mxu0
        %v2004 = vadd.f32 0.0, %v2003
        %2005 = vmatprep.mubr.bf16.mxu0 0
        %2006 = vmatmul.mubr.bf16.gmra.mxu0 %v1833
        %v2007 = vpop.f32.mrf.mxu0
        %v2008 = vadd.f32 0.0, %v2007
        %v2009 = vpop.f32.mrf.mxu0
        %v2010 = vadd.f32 0.0, %v2009
        %v2011 = vpop.f32.mrf.mxu0
        %v2012 = vadd.f32 0.0, %v2011
        %v2013 = vpop.f32.mrf.mxu0
        %v2014 = vadd.f32 0.0, %v2013
        %2015 = vmatprep.mubr.bf16.mxu0 0
        %2016 = vmatmul.mubr.bf16.gmra.mxu0 %v1834
        %v2017 = vpop.f32.mrf.mxu0
        %v2018 = vadd.f32 0.0, %v2017
        %v2019 = vpop.f32.mrf.mxu0
        %v2020 = vadd.f32 0.0, %v2019
        %v2021 = vpop.f32.mrf.mxu0
        %v2022 = vadd.f32 0.0, %v2021
        %v2023 = vpop.f32.mrf.mxu0
        %v2024 = vadd.f32 0.0, %v2023
        %2025 = vmatprep.mubr.bf16.mxu0 0
        %2026 = vmatmul.mubr.bf16.gmra.mxu0 %v1835
        %v2027 = vpop.f32.mrf.mxu0
        %v2028 = vadd.f32 0.0, %v2027
        %v2029 = vpop.f32.mrf.mxu0
        %v2030 = vadd.f32 0.0, %v2029
        %v2031 = vpop.f32.mrf.mxu0
        %v2032 = vadd.f32 0.0, %v2031
        %v2033 = vpop.f32.mrf.mxu0
        %v2034 = vadd.f32 0.0, %v2033
        %2035 = vmatprep.mubr.bf16.mxu0 0
        %2036 = vmatmul.mubr.bf16.gmra.mxu0 %v1836
        %v2037 = vpop.f32.mrf.mxu0
        %v2038 = vadd.f32 0.0, %v2037
        %v2039 = vpop.f32.mrf.mxu0
        %v2040 = vadd.f32 0.0, %v2039
        %v2041 = vpop.f32.mrf.mxu0
        %v2042 = vadd.f32 0.0, %v2041
        %v2043 = vpop.f32.mrf.mxu0
        %v2044 = vadd.f32 0.0, %v2043
        %2045 = vdwg.mxu0
        %vm2046 = vcmp.gt.f32.partialorder %v1968, 0.0
        %vm2047 = vcmp.gt.f32.partialorder %v1970, 0.0
        %vm2048 = vcmp.gt.f32.partialorder %v1972, 0.0
        %vm2049 = vcmp.gt.f32.partialorder %v1974, 0.0
        %vm2050 = vcmp.gt.f32.partialorder %v1978, 0.0
        %vm2051 = vcmp.gt.f32.partialorder %v1980, 0.0
        %vm2052 = vcmp.gt.f32.partialorder %v1982, 0.0
        %vm2053 = vcmp.gt.f32.partialorder %v1984, 0.0
        %vm2054 = vcmp.gt.f32.partialorder %v1988, 0.0
        %vm2055 = vcmp.gt.f32.partialorder %v1990, 0.0
        %vm2056 = vcmp.gt.f32.partialorder %v1992, 0.0
        %vm2057 = vcmp.gt.f32.partialorder %v1994, 0.0
        %vm2058 = vcmp.gt.f32.partialorder %v1998, 0.0
        %vm2059 = vcmp.gt.f32.partialorder %v2000, 0.0
        %vm2060 = vcmp.gt.f32.partialorder %v2002, 0.0
        %vm2061 = vcmp.gt.f32.partialorder %v2004, 0.0
        %vm2062 = vcmp.gt.f32.partialorder %v2008, 0.0
        %vm2063 = vcmp.gt.f32.partialorder %v2010, 0.0
        %vm2064 = vcmp.gt.f32.partialorder %v2012, 0.0
        %vm2065 = vcmp.gt.f32.partialorder %v2014, 0.0
        %vm2066 = vcmp.gt.f32.partialorder %v2018, 0.0
        %vm2067 = vcmp.gt.f32.partialorder %v2020, 0.0
        %vm2068 = vcmp.gt.f32.partialorder %v2022, 0.0
        %vm2069 = vcmp.gt.f32.partialorder %v2024, 0.0
        %vm2070 = vcmp.gt.f32.partialorder %v2028, 0.0
        %vm2071 = vcmp.gt.f32.partialorder %v2030, 0.0
        %vm2072 = vcmp.gt.f32.partialorder %v2032, 0.0
        %vm2073 = vcmp.gt.f32.partialorder %v2034, 0.0
        %vm2074 = vcmp.gt.f32.partialorder %v2038, 0.0
        %vm2075 = vcmp.gt.f32.partialorder %v2040, 0.0
        %vm2076 = vcmp.gt.f32.partialorder %v2042, 0.0
        %vm2077 = vcmp.gt.f32.partialorder %v2044, 0.0
        %v2078 = vmul.f32 %v1968, 0.2
        %v2079 = vmul.f32 %v1970, 0.2
        %v2080 = vmul.f32 %v1972, 0.2
        %v2081 = vmul.f32 %v1974, 0.2
        %v2082 = vmul.f32 %v1978, 0.2
        %v2083 = vmul.f32 %v1980, 0.2
        %v2084 = vmul.f32 %v1982, 0.2
        %v2085 = vmul.f32 %v1984, 0.2
        %v2086 = vmul.f32 %v1988, 0.2
        %v2087 = vmul.f32 %v1990, 0.2
        %v2088 = vmul.f32 %v1992, 0.2
        %v2089 = vmul.f32 %v1994, 0.2
        %v2090 = vmul.f32 %v1998, 0.2
        %v2091 = vmul.f32 %v2000, 0.2
        %v2092 = vmul.f32 %v2002, 0.2
        %v2093 = vmul.f32 %v2004, 0.2
        %v2094 = vmul.f32 %v2008, 0.2
        %v2095 = vmul.f32 %v2010, 0.2
        %v2096 = vmul.f32 %v2012, 0.2
        %v2097 = vmul.f32 %v2014, 0.2
        %v2098 = vmul.f32 %v2018, 0.2
        %v2099 = vmul.f32 %v2020, 0.2
        %v2100 = vmul.f32 %v2022, 0.2
        %v2101 = vmul.f32 %v2024, 0.2
        %v2102 = vmul.f32 %v2028, 0.2
        %v2103 = vmul.f32 %v2030, 0.2
        %v2104 = vmul.f32 %v2032, 0.2
        %v2105 = vmul.f32 %v2034, 0.2
        %v2106 = vmul.f32 %v2038, 0.2
        %v2107 = vmul.f32 %v2040, 0.2
        %v2108 = vmul.f32 %v2042, 0.2
        %v2109 = vmul.f32 %v2044, 0.2
        %v2110 = vsel %vm2046, %v1968, %v2078
        %v2111 = vsel %vm2047, %v1970, %v2079
        %v2112 = vsel %vm2048, %v1972, %v2080
        %v2113 = vsel %vm2049, %v1974, %v2081
        %v2114 = vsel %vm2050, %v1978, %v2082
        %v2115 = vsel %vm2051, %v1980, %v2083
        %v2116 = vsel %vm2052, %v1982, %v2084
        %v2117 = vsel %vm2053, %v1984, %v2085
        %v2118 = vsel %vm2054, %v1988, %v2086
        %v2119 = vsel %vm2055, %v1990, %v2087
        %v2120 = vsel %vm2056, %v1992, %v2088
        %v2121 = vsel %vm2057, %v1994, %v2089
        %v2122 = vsel %vm2058, %v1998, %v2090
        %v2123 = vsel %vm2059, %v2000, %v2091
        %v2124 = vsel %vm2060, %v2002, %v2092
        %v2125 = vsel %vm2061, %v2004, %v2093
        %v2126 = vsel %vm2062, %v2008, %v2094
        %v2127 = vsel %vm2063, %v2010, %v2095
        %v2128 = vsel %vm2064, %v2012, %v2096
        %v2129 = vsel %vm2065, %v2014, %v2097
        %v2130 = vsel %vm2066, %v2018, %v2098
        %v2131 = vsel %vm2067, %v2020, %v2099
        %v2132 = vsel %vm2068, %v2022, %v2100
        %v2133 = vsel %vm2069, %v2024, %v2101
        %v2134 = vsel %vm2070, %v2028, %v2102
        %v2135 = vsel %vm2071, %v2030, %v2103
        %v2136 = vsel %vm2072, %v2032, %v2104
        %v2137 = vsel %vm2073, %v2034, %v2105
        %v2138 = vsel %vm2074, %v2038, %v2106
        %v2139 = vsel %vm2075, %v2040, %v2107
        %v2140 = vsel %vm2076, %v2042, %v2108
        %v2141 = vsel %vm2077, %v2044, %v2109
        %v2142 = vpack.c.bf16 %v2112, %v2110
        %v2143 = vpack.c.bf16 %v2113, %v2111
        %v2144 = vpack.c.bf16 %v2116, %v2114
        %v2145 = vpack.c.bf16 %v2117, %v2115
        %v2146 = vpack.c.bf16 %v2120, %v2118
        %v2147 = vpack.c.bf16 %v2121, %v2119
        %v2148 = vpack.c.bf16 %v2124, %v2122
        %v2149 = vpack.c.bf16 %v2125, %v2123
        %v2150 = vpack.c.bf16 %v2128, %v2126
        %v2151 = vpack.c.bf16 %v2129, %v2127
        %v2152 = vpack.c.bf16 %v2132, %v2130
        %v2153 = vpack.c.bf16 %v2133, %v2131
        %v2154 = vpack.c.bf16 %v2136, %v2134
        %v2155 = vpack.c.bf16 %v2137, %v2135
        %v2156 = vpack.c.bf16 %v2140, %v2138
        %v2157 = vpack.c.bf16 %v2141, %v2139
        %v2158 = vld [vmem:[#allocation6] sm:$0xf]
        %v2159 = vld [vmem:[#allocation6 + $0x4] sm:$0xf]
        %v2160 = vld [vmem:[#allocation6 + $0x8] sm:$0xf]
        %v2161 = vld [vmem:[#allocation6 + $0xc] sm:$0xf]
        %v2162 = vld [vmem:[#allocation6 + $0x10] sm:$0xf]
        %v2163 = vld [vmem:[#allocation6 + $0x14] sm:$0xf]
        %v2164 = vld [vmem:[#allocation6 + $0x18] sm:$0xf]
        %v2165 = vld [vmem:[#allocation6 + $0x1c] sm:$0xf]
        %v2166 = vld [vmem:[#allocation6 + $0x20] sm:$0xf]
        %v2167 = vld [vmem:[#allocation6 + $0x24] sm:$0xf]
        %v2168 = vld [vmem:[#allocation6 + $0x28] sm:$0xf]
        %v2169 = vld [vmem:[#allocation6 + $0x2c] sm:$0xf]
        %v2170 = vld [vmem:[#allocation6 + $0x30] sm:$0xf]
        %v2171 = vld [vmem:[#allocation6 + $0x34] sm:$0xf]
        %v2172 = vld [vmem:[#allocation6 + $0x38] sm:$0xf]
        %v2173 = vld [vmem:[#allocation6 + $0x3c] sm:$0xf]
        %v2174 = vld [vmem:[#allocation6 + $0x40] sm:$0xf]
        %v2175 = vld [vmem:[#allocation6 + $0x44] sm:$0xf]
        %v2176 = vld [vmem:[#allocation6 + $0x48] sm:$0xf]
        %v2177 = vld [vmem:[#allocation6 + $0x4c] sm:$0xf]
        %v2178 = vld [vmem:[#allocation6 + $0x50] sm:$0xf]
        %v2179 = vld [vmem:[#allocation6 + $0x54] sm:$0xf]
        %v2180 = vld [vmem:[#allocation6 + $0x58] sm:$0xf]
        %v2181 = vld [vmem:[#allocation6 + $0x5c] sm:$0xf]
        %v2182 = vld [vmem:[#allocation6 + $0x60] sm:$0xf]
        %v2183 = vld [vmem:[#allocation6 + $0x64] sm:$0xf]
        %v2184 = vld [vmem:[#allocation6 + $0x68] sm:$0xf]
        %v2185 = vld [vmem:[#allocation6 + $0x6c] sm:$0xf]
        %v2186 = vld [vmem:[#allocation6 + $0x70] sm:$0xf]
        %v2187 = vld [vmem:[#allocation6 + $0x74] sm:$0xf]
        %v2188 = vld [vmem:[#allocation6 + $0x78] sm:$0xf]
        %v2189 = vld [vmem:[#allocation6 + $0x7c] sm:$0xf]
        %v2222 = vunpack.c.l.b16 %v2158
        %v2223 = vunpack.c.l.b16 %v2159
        %v2224 = vunpack.c.l.b16 %v2160
        %v2225 = vunpack.c.l.b16 %v2161
        %v2226 = vunpack.c.l.b16 %v2162
        %v2227 = vunpack.c.l.b16 %v2163
        %v2228 = vunpack.c.l.b16 %v2164
        %v2229 = vunpack.c.l.b16 %v2165
        %v2230 = vunpack.c.l.b16 %v2166
        %v2231 = vunpack.c.l.b16 %v2167
        %v2232 = vunpack.c.l.b16 %v2168
        %v2233 = vunpack.c.l.b16 %v2169
        %v2234 = vunpack.c.l.b16 %v2170
        %v2235 = vunpack.c.l.b16 %v2171
        %v2236 = vunpack.c.l.b16 %v2172
        %v2237 = vunpack.c.l.b16 %v2173
        %v2238 = vunpack.c.l.b16 %v2174
        %v2239 = vunpack.c.l.b16 %v2175
        %v2240 = vunpack.c.l.b16 %v2176
        %v2241 = vunpack.c.l.b16 %v2177
        %v2242 = vunpack.c.l.b16 %v2178
        %v2243 = vunpack.c.l.b16 %v2179
        %v2244 = vunpack.c.l.b16 %v2180
        %v2245 = vunpack.c.l.b16 %v2181
        %v2246 = vunpack.c.l.b16 %v2182
        %v2247 = vunpack.c.l.b16 %v2183
        %v2248 = vunpack.c.l.b16 %v2184
        %v2249 = vunpack.c.l.b16 %v2185
        %v2250 = vunpack.c.l.b16 %v2186
        %v2251 = vunpack.c.l.b16 %v2187
        %v2252 = vunpack.c.l.b16 %v2188
        %v2253 = vunpack.c.l.b16 %v2189
        %v2254 = vpack.c.b16 %v2223, %v2222
        %v2255 = vpack.c.b16 %v2225, %v2224
        %v2256 = vpack.c.b16 %v2227, %v2226
        %v2257 = vpack.c.b16 %v2229, %v2228
        %v2258 = vpack.c.b16 %v2231, %v2230
        %v2259 = vpack.c.b16 %v2233, %v2232
        %v2260 = vpack.c.b16 %v2235, %v2234
        %v2261 = vpack.c.b16 %v2237, %v2236
        %v2262 = vpack.c.b16 %v2239, %v2238
        %v2263 = vpack.c.b16 %v2241, %v2240
        %v2264 = vpack.c.b16 %v2243, %v2242
        %v2265 = vpack.c.b16 %v2245, %v2244
        %v2266 = vpack.c.b16 %v2247, %v2246
        %v2267 = vpack.c.b16 %v2249, %v2248
        %v2268 = vpack.c.b16 %v2251, %v2250
        %v2269 = vpack.c.b16 %v2253, %v2252
        %2286 = vmatprep.subr.bf16.mxu0 0
        %2287 = vmatpush1.bf16.msra.mxu0 %v2261
        %2288 = vmatprep.subr.bf16.mxu0 0
        %2289 = vmatpush1.bf16.msra.mxu0 %v2260
        %2290 = vmatprep.subr.bf16.mxu0 0
        %2291 = vmatpush1.bf16.msra.mxu0 %v2259
        %2292 = vmatprep.subr.bf16.mxu0 0
        %2293 = vmatpush1.bf16.msra.mxu0 %v2258
        %2294 = vmatprep.subr.bf16.mxu0 0
        %2295 = vmatpush1.bf16.msra.mxu0 %v2257
        %2296 = vmatprep.subr.bf16.mxu0 0
        %2297 = vmatpush1.bf16.msra.mxu0 %v2256
        %2298 = vmatprep.subr.bf16.mxu0 0
        %2299 = vmatpush1.bf16.msra.mxu0 %v2255
        %2300 = vmatprep.subr.bf16.mxu0 0
        %2301 = vmatpush1.bf16.msra.mxu0 %v2254
        %2302 = vmatprep.subr.bf16.mxu0 0
        %2303 = vmatpush2.bf16.msra.mxu0 %v2269
        %2304 = vmatprep.subr.bf16.mxu0 0
        %2305 = vmatpush2.bf16.msra.mxu0 %v2268
        %2306 = vmatprep.subr.bf16.mxu0 0
        %2307 = vmatpush2.bf16.msra.mxu0 %v2267
        %2308 = vmatprep.subr.bf16.mxu0 0
        %2309 = vmatpush2.bf16.msra.mxu0 %v2266
        %2310 = vmatprep.subr.bf16.mxu0 0
        %2311 = vmatpush2.bf16.msra.mxu0 %v2265
        %2312 = vmatprep.subr.bf16.mxu0 0
        %2313 = vmatpush2.bf16.msra.mxu0 %v2264
        %2314 = vmatprep.subr.bf16.mxu0 0
        %2315 = vmatpush2.bf16.msra.mxu0 %v2263
        %2316 = vmatprep.subr.bf16.mxu0 0
        %2317 = vmatpush2.bf16.msra.mxu0 %v2262
        %2318 = vmatprep.mubr.bf16.mxu0 %v2143
        %2319 = vmatmul.mubr.bf16.gmra.mxu0 %v2142
        %v2320 = vpop.f32.mrf.mxu0
        %v2321 = vadd.f32 0.0, %v2320
        %v2322 = vpop.f32.mrf.mxu0
        %v2323 = vpop.f32.mrf.mxu0
        %v2324 = vadd.f32 0.0, %v2323
        %v2325 = vpop.f32.mrf.mxu0
        %2326 = vmatprep.mubr.bf16.mxu0 %v2145
        %2327 = vmatmul.mubr.bf16.gmra.mxu0 %v2144
        %v2328 = vpop.f32.mrf.mxu0
        %v2329 = vadd.f32 0.0, %v2328
        %v2330 = vpop.f32.mrf.mxu0
        %v2331 = vpop.f32.mrf.mxu0
        %v2332 = vadd.f32 0.0, %v2331
        %v2333 = vpop.f32.mrf.mxu0
        %2334 = vmatprep.mubr.bf16.mxu0 %v2147
        %2335 = vmatmul.mubr.bf16.gmra.mxu0 %v2146
        %v2336 = vpop.f32.mrf.mxu0
        %v2337 = vadd.f32 0.0, %v2336
        %v2338 = vpop.f32.mrf.mxu0
        %v2339 = vpop.f32.mrf.mxu0
        %v2340 = vadd.f32 0.0, %v2339
        %v2341 = vpop.f32.mrf.mxu0
        %2342 = vmatprep.mubr.bf16.mxu0 %v2149
        %2343 = vmatmul.mubr.bf16.gmra.mxu0 %v2148
        %v2344 = vpop.f32.mrf.mxu0
        %v2345 = vadd.f32 0.0, %v2344
        %v2346 = vpop.f32.mrf.mxu0
        %v2347 = vpop.f32.mrf.mxu0
        %v2348 = vadd.f32 0.0, %v2347
        %v2349 = vpop.f32.mrf.mxu0
        %2350 = vmatprep.mubr.bf16.mxu0 %v2151
        %2351 = vmatmul.mubr.bf16.gmra.mxu0 %v2150
        %v2352 = vpop.f32.mrf.mxu0
        %v2353 = vadd.f32 0.0, %v2352
        %v2354 = vpop.f32.mrf.mxu0
        %v2355 = vpop.f32.mrf.mxu0
        %v2356 = vadd.f32 0.0, %v2355
        %v2357 = vpop.f32.mrf.mxu0
        %2358 = vmatprep.mubr.bf16.mxu0 %v2153
        %2359 = vmatmul.mubr.bf16.gmra.mxu0 %v2152
        %v2360 = vpop.f32.mrf.mxu0
        %v2361 = vadd.f32 0.0, %v2360
        %v2362 = vpop.f32.mrf.mxu0
        %v2363 = vpop.f32.mrf.mxu0
        %v2364 = vadd.f32 0.0, %v2363
        %v2365 = vpop.f32.mrf.mxu0
        %2366 = vmatprep.mubr.bf16.mxu0 %v2155
        %2367 = vmatmul.mubr.bf16.gmra.mxu0 %v2154
        %v2368 = vpop.f32.mrf.mxu0
        %v2369 = vadd.f32 0.0, %v2368
        %v2370 = vpop.f32.mrf.mxu0
        %v2371 = vpop.f32.mrf.mxu0
        %v2372 = vadd.f32 0.0, %v2371
        %v2373 = vpop.f32.mrf.mxu0
        %2374 = vmatprep.mubr.bf16.mxu0 %v2157
        %2375 = vmatmul.mubr.bf16.gmra.mxu0 %v2156
        %v2376 = vpop.f32.mrf.mxu0
        %v2377 = vadd.f32 0.0, %v2376
        %v2378 = vpop.f32.mrf.mxu0
        %v2379 = vpop.f32.mrf.mxu0
        %v2380 = vadd.f32 0.0, %v2379
        %v2381 = vpop.f32.mrf.mxu0
        %2382 = vdwg.mxu0
        %vm2383 = vcmp.gt.f32.partialorder %v2321, 0.0
        %vm2384 = vcmp.gt.f32.partialorder %v2324, 0.0
        %vm2385 = vcmp.gt.f32.partialorder %v2329, 0.0
        %vm2386 = vcmp.gt.f32.partialorder %v2332, 0.0
        %vm2387 = vcmp.gt.f32.partialorder %v2337, 0.0
        %vm2388 = vcmp.gt.f32.partialorder %v2340, 0.0
        %vm2389 = vcmp.gt.f32.partialorder %v2345, 0.0
        %vm2390 = vcmp.gt.f32.partialorder %v2348, 0.0
        %vm2391 = vcmp.gt.f32.partialorder %v2353, 0.0
        %vm2392 = vcmp.gt.f32.partialorder %v2356, 0.0
        %vm2393 = vcmp.gt.f32.partialorder %v2361, 0.0
        %vm2394 = vcmp.gt.f32.partialorder %v2364, 0.0
        %vm2395 = vcmp.gt.f32.partialorder %v2369, 0.0
        %vm2396 = vcmp.gt.f32.partialorder %v2372, 0.0
        %vm2397 = vcmp.gt.f32.partialorder %v2377, 0.0
        %vm2398 = vcmp.gt.f32.partialorder %v2380, 0.0
        %v2399 = vmul.f32 %v2321, 0.2
        %v2400 = vmul.f32 %v2324, 0.2
        %v2401 = vmul.f32 %v2329, 0.2
        %v2402 = vmul.f32 %v2332, 0.2
        %v2403 = vmul.f32 %v2337, 0.2
        %v2404 = vmul.f32 %v2340, 0.2
        %v2405 = vmul.f32 %v2345, 0.2
        %v2406 = vmul.f32 %v2348, 0.2
        %v2407 = vmul.f32 %v2353, 0.2
        %v2408 = vmul.f32 %v2356, 0.2
        %v2409 = vmul.f32 %v2361, 0.2
        %v2410 = vmul.f32 %v2364, 0.2
        %v2411 = vmul.f32 %v2369, 0.2
        %v2412 = vmul.f32 %v2372, 0.2
        %v2413 = vmul.f32 %v2377, 0.2
        %v2414 = vmul.f32 %v2380, 0.2
        %v2415 = vsel %vm2383, %v2321, %v2399
        %v2416 = vsel %vm2384, %v2324, %v2400
        %v2417 = vsel %vm2385, %v2329, %v2401
        %v2418 = vsel %vm2386, %v2332, %v2402
        %v2419 = vsel %vm2387, %v2337, %v2403
        %v2420 = vsel %vm2388, %v2340, %v2404
        %v2421 = vsel %vm2389, %v2345, %v2405
        %v2422 = vsel %vm2390, %v2348, %v2406
        %v2423 = vsel %vm2391, %v2353, %v2407
        %v2424 = vsel %vm2392, %v2356, %v2408
        %v2425 = vsel %vm2393, %v2361, %v2409
        %v2426 = vsel %vm2394, %v2364, %v2410
        %v2427 = vsel %vm2395, %v2369, %v2411
        %v2428 = vsel %vm2396, %v2372, %v2412
        %v2429 = vsel %vm2397, %v2377, %v2413
        %v2430 = vsel %vm2398, %v2380, %v2414
        %v2431 = vpack.c.bf16 %v2416, %v2415
        %v2432 = vpack.c.bf16 %v2418, %v2417
        %v2433 = vpack.c.bf16 %v2420, %v2419
        %v2434 = vpack.c.bf16 %v2422, %v2421
        %v2435 = vpack.c.bf16 %v2424, %v2423
        %v2436 = vpack.c.bf16 %v2426, %v2425
        %v2437 = vpack.c.bf16 %v2428, %v2427
        %v2438 = vpack.c.bf16 %v2430, %v2429
        %v2439 = vld [vmem:[#allocation7] sm:$0xff]
        %v2440 = vld [vmem:[#allocation7 + $0x8] sm:$0xff]
        %v2441 = vld [vmem:[#allocation7 + $0x10] sm:$0xff]
        %v2442 = vld [vmem:[#allocation7 + $0x18] sm:$0xff]
        %v2443 = vld [vmem:[#allocation7 + $0x20] sm:$0xff]
        %v2444 = vld [vmem:[#allocation7 + $0x28] sm:$0xff]
        %v2445 = vld [vmem:[#allocation7 + $0x30] sm:$0xff]
        %v2446 = vld [vmem:[#allocation7 + $0x38] sm:$0xff]
        %v2447 = vld [vmem:[#allocation7 + $0x40] sm:$0xff]
        %v2448 = vld [vmem:[#allocation7 + $0x48] sm:$0xff]
        %v2449 = vld [vmem:[#allocation7 + $0x50] sm:$0xff]
        %v2450 = vld [vmem:[#allocation7 + $0x58] sm:$0xff]
        %v2451 = vld [vmem:[#allocation7 + $0x60] sm:$0xff]
        %v2452 = vld [vmem:[#allocation7 + $0x68] sm:$0xff]
        %v2453 = vld [vmem:[#allocation7 + $0x70] sm:$0xff]
        %v2454 = vld [vmem:[#allocation7 + $0x78] sm:$0xff]
        %v2471 = vunpack.c.l.b16 %v2439
        %v2472 = vunpack.c.h.b16 %v2439
        %v2473 = vunpack.c.l.b16 %v2440
        %v2474 = vunpack.c.h.b16 %v2440
        %v2475 = vunpack.c.l.b16 %v2441
        %v2476 = vunpack.c.h.b16 %v2441
        %v2477 = vunpack.c.l.b16 %v2442
        %v2478 = vunpack.c.h.b16 %v2442
        %v2479 = vunpack.c.l.b16 %v2443
        %v2480 = vunpack.c.h.b16 %v2443
        %v2481 = vunpack.c.l.b16 %v2444
        %v2482 = vunpack.c.h.b16 %v2444
        %v2483 = vunpack.c.l.b16 %v2445
        %v2484 = vunpack.c.h.b16 %v2445
        %v2485 = vunpack.c.l.b16 %v2446
        %v2486 = vunpack.c.h.b16 %v2446
        %v2487 = vunpack.c.l.b16 %v2447
        %v2488 = vunpack.c.h.b16 %v2447
        %v2489 = vunpack.c.l.b16 %v2448
        %v2490 = vunpack.c.h.b16 %v2448
        %v2491 = vunpack.c.l.b16 %v2449
        %v2492 = vunpack.c.h.b16 %v2449
        %v2493 = vunpack.c.l.b16 %v2450
        %v2494 = vunpack.c.h.b16 %v2450
        %v2495 = vunpack.c.l.b16 %v2451
        %v2496 = vunpack.c.h.b16 %v2451
        %v2497 = vunpack.c.l.b16 %v2452
        %v2498 = vunpack.c.h.b16 %v2452
        %v2499 = vunpack.c.l.b16 %v2453
        %v2500 = vunpack.c.h.b16 %v2453
        %v2501 = vunpack.c.l.b16 %v2454
        %v2502 = vunpack.c.h.b16 %v2454
        %v2503 = vpack.c.b16 %v2473, %v2471
        %v2504 = vpack.c.b16 %v2474, %v2472
        %v2505 = vpack.c.b16 %v2477, %v2475
        %v2506 = vpack.c.b16 %v2478, %v2476
        %v2507 = vpack.c.b16 %v2481, %v2479
        %v2508 = vpack.c.b16 %v2482, %v2480
        %v2509 = vpack.c.b16 %v2485, %v2483
        %v2510 = vpack.c.b16 %v2486, %v2484
        %v2511 = vpack.c.b16 %v2489, %v2487
        %v2512 = vpack.c.b16 %v2490, %v2488
        %v2513 = vpack.c.b16 %v2493, %v2491
        %v2514 = vpack.c.b16 %v2494, %v2492
        %v2515 = vpack.c.b16 %v2497, %v2495
        %v2516 = vpack.c.b16 %v2498, %v2496
        %v2517 = vpack.c.b16 %v2501, %v2499
        %v2518 = vpack.c.b16 %v2502, %v2500
        %2535 = vmatprep.subr.bf16.mxu0 %v2518
        %2536 = vmatpush1.bf16.msra.mxu0 %v2517
        %2537 = vmatprep.subr.bf16.mxu0 %v2516
        %2538 = vmatpush1.bf16.msra.mxu0 %v2515
        %2539 = vmatprep.subr.bf16.mxu0 %v2514
        %2540 = vmatpush1.bf16.msra.mxu0 %v2513
        %2541 = vmatprep.subr.bf16.mxu0 %v2512
        %2542 = vmatpush1.bf16.msra.mxu0 %v2511
        %2543 = vmatprep.subr.bf16.mxu0 %v2510
        %2544 = vmatpush1.bf16.msra.mxu0 %v2509
        %2545 = vmatprep.subr.bf16.mxu0 %v2508
        %2546 = vmatpush1.bf16.msra.mxu0 %v2507
        %2547 = vmatprep.subr.bf16.mxu0 %v2506
        %2548 = vmatpush1.bf16.msra.mxu0 %v2505
        %2549 = vmatprep.subr.bf16.mxu0 %v2504
        %2550 = vmatpush1.bf16.msra.mxu0 %v2503
        %2551 = vmatprep.subr.bf16.mxu0 0
        %2552 = vmatpush2.bf16.msra.mxu0 0
        %2553 = vmatprep.subr.bf16.mxu0 0
        %2554 = vmatpush2.bf16.msra.mxu0 0
        %2555 = vmatprep.subr.bf16.mxu0 0
        %2556 = vmatpush2.bf16.msra.mxu0 0
        %2557 = vmatprep.subr.bf16.mxu0 0
        %2558 = vmatpush2.bf16.msra.mxu0 0
        %2559 = vmatprep.subr.bf16.mxu0 0
        %2560 = vmatpush2.bf16.msra.mxu0 0
        %2561 = vmatprep.subr.bf16.mxu0 0
        %2562 = vmatpush2.bf16.msra.mxu0 0
        %2563 = vmatprep.subr.bf16.mxu0 0
        %2564 = vmatpush2.bf16.msra.mxu0 0
        %2565 = vmatprep.subr.bf16.mxu0 0
        %2566 = vmatpush2.bf16.msra.mxu0 0
        %2567 = vmatprep.mubr.bf16.mxu0 0
        %2568 = vmatmul.mubr.bf16.gmra.mxu0 %v2431
        %v2569 = vpop.f32.mrf.mxu0
        %v2570 = vadd.f32 0.0, %v2569
        %v2571 = vpop.f32.mrf.mxu0
        %v2572 = vadd.f32 0.0, %v2571
        %v2573 = vpop.f32.mrf.mxu0
        %v2574 = vadd.f32 0.0, %v2573
        %v2575 = vpop.f32.mrf.mxu0
        %v2576 = vadd.f32 0.0, %v2575
        %2577 = vmatprep.mubr.bf16.mxu0 0
        %2578 = vmatmul.mubr.bf16.gmra.mxu0 %v2432
        %v2579 = vpop.f32.mrf.mxu0
        %v2580 = vadd.f32 0.0, %v2579
        %v2581 = vpop.f32.mrf.mxu0
        %v2582 = vadd.f32 0.0, %v2581
        %v2583 = vpop.f32.mrf.mxu0
        %v2584 = vadd.f32 0.0, %v2583
        %v2585 = vpop.f32.mrf.mxu0
        %v2586 = vadd.f32 0.0, %v2585
        %2587 = vmatprep.mubr.bf16.mxu0 0
        %2588 = vmatmul.mubr.bf16.gmra.mxu0 %v2433
        %v2589 = vpop.f32.mrf.mxu0
        %v2590 = vadd.f32 0.0, %v2589
        %v2591 = vpop.f32.mrf.mxu0
        %v2592 = vadd.f32 0.0, %v2591
        %v2593 = vpop.f32.mrf.mxu0
        %v2594 = vadd.f32 0.0, %v2593
        %v2595 = vpop.f32.mrf.mxu0
        %v2596 = vadd.f32 0.0, %v2595
        %2597 = vmatprep.mubr.bf16.mxu0 0
        %2598 = vmatmul.mubr.bf16.gmra.mxu0 %v2434
        %v2599 = vpop.f32.mrf.mxu0
        %v2600 = vadd.f32 0.0, %v2599
        %v2601 = vpop.f32.mrf.mxu0
        %v2602 = vadd.f32 0.0, %v2601
        %v2603 = vpop.f32.mrf.mxu0
        %v2604 = vadd.f32 0.0, %v2603
        %v2605 = vpop.f32.mrf.mxu0
        %v2606 = vadd.f32 0.0, %v2605
        %2607 = vmatprep.mubr.bf16.mxu0 0
        %2608 = vmatmul.mubr.bf16.gmra.mxu0 %v2435
        %v2609 = vpop.f32.mrf.mxu0
        %v2610 = vadd.f32 0.0, %v2609
        %v2611 = vpop.f32.mrf.mxu0
        %v2612 = vadd.f32 0.0, %v2611
        %v2613 = vpop.f32.mrf.mxu0
        %v2614 = vadd.f32 0.0, %v2613
        %v2615 = vpop.f32.mrf.mxu0
        %v2616 = vadd.f32 0.0, %v2615
        %2617 = vmatprep.mubr.bf16.mxu0 0
        %2618 = vmatmul.mubr.bf16.gmra.mxu0 %v2436
        %v2619 = vpop.f32.mrf.mxu0
        %v2620 = vadd.f32 0.0, %v2619
        %v2621 = vpop.f32.mrf.mxu0
        %v2622 = vadd.f32 0.0, %v2621
        %v2623 = vpop.f32.mrf.mxu0
        %v2624 = vadd.f32 0.0, %v2623
        %v2625 = vpop.f32.mrf.mxu0
        %v2626 = vadd.f32 0.0, %v2625
        %2627 = vmatprep.mubr.bf16.mxu0 0
        %2628 = vmatmul.mubr.bf16.gmra.mxu0 %v2437
        %v2629 = vpop.f32.mrf.mxu0
        %v2630 = vadd.f32 0.0, %v2629
        %v2631 = vpop.f32.mrf.mxu0
        %v2632 = vadd.f32 0.0, %v2631
        %v2633 = vpop.f32.mrf.mxu0
        %v2634 = vadd.f32 0.0, %v2633
        %v2635 = vpop.f32.mrf.mxu0
        %v2636 = vadd.f32 0.0, %v2635
        %2637 = vmatprep.mubr.bf16.mxu0 0
        %2638 = vmatmul.mubr.bf16.gmra.mxu0 %v2438
        %v2639 = vpop.f32.mrf.mxu0
        %v2640 = vadd.f32 0.0, %v2639
        %v2641 = vpop.f32.mrf.mxu0
        %v2642 = vadd.f32 0.0, %v2641
        %v2643 = vpop.f32.mrf.mxu0
        %v2644 = vadd.f32 0.0, %v2643
        %v2645 = vpop.f32.mrf.mxu0
        %v2646 = vadd.f32 0.0, %v2645
        %2647 = vdwg.mxu0
        %vm2648 = vcmp.gt.f32.partialorder %v2570, 0.0
        %vm2649 = vcmp.gt.f32.partialorder %v2572, 0.0
        %vm2650 = vcmp.gt.f32.partialorder %v2574, 0.0
        %vm2651 = vcmp.gt.f32.partialorder %v2576, 0.0
        %vm2652 = vcmp.gt.f32.partialorder %v2580, 0.0
        %vm2653 = vcmp.gt.f32.partialorder %v2582, 0.0
        %vm2654 = vcmp.gt.f32.partialorder %v2584, 0.0
        %vm2655 = vcmp.gt.f32.partialorder %v2586, 0.0
        %vm2656 = vcmp.gt.f32.partialorder %v2590, 0.0
        %vm2657 = vcmp.gt.f32.partialorder %v2592, 0.0
        %vm2658 = vcmp.gt.f32.partialorder %v2594, 0.0
        %vm2659 = vcmp.gt.f32.partialorder %v2596, 0.0
        %vm2660 = vcmp.gt.f32.partialorder %v2600, 0.0
        %vm2661 = vcmp.gt.f32.partialorder %v2602, 0.0
        %vm2662 = vcmp.gt.f32.partialorder %v2604, 0.0
        %vm2663 = vcmp.gt.f32.partialorder %v2606, 0.0
        %vm2664 = vcmp.gt.f32.partialorder %v2610, 0.0
        %vm2665 = vcmp.gt.f32.partialorder %v2612, 0.0
        %vm2666 = vcmp.gt.f32.partialorder %v2614, 0.0
        %vm2667 = vcmp.gt.f32.partialorder %v2616, 0.0
        %vm2668 = vcmp.gt.f32.partialorder %v2620, 0.0
        %vm2669 = vcmp.gt.f32.partialorder %v2622, 0.0
        %vm2670 = vcmp.gt.f32.partialorder %v2624, 0.0
        %vm2671 = vcmp.gt.f32.partialorder %v2626, 0.0
        %vm2672 = vcmp.gt.f32.partialorder %v2630, 0.0
        %vm2673 = vcmp.gt.f32.partialorder %v2632, 0.0
        %vm2674 = vcmp.gt.f32.partialorder %v2634, 0.0
        %vm2675 = vcmp.gt.f32.partialorder %v2636, 0.0
        %vm2676 = vcmp.gt.f32.partialorder %v2640, 0.0
        %vm2677 = vcmp.gt.f32.partialorder %v2642, 0.0
        %vm2678 = vcmp.gt.f32.partialorder %v2644, 0.0
        %vm2679 = vcmp.gt.f32.partialorder %v2646, 0.0
        %v2680 = vmul.f32 %v2570, 0.2
        %v2681 = vmul.f32 %v2572, 0.2
        %v2682 = vmul.f32 %v2574, 0.2
        %v2683 = vmul.f32 %v2576, 0.2
        %v2684 = vmul.f32 %v2580, 0.2
        %v2685 = vmul.f32 %v2582, 0.2
        %v2686 = vmul.f32 %v2584, 0.2
        %v2687 = vmul.f32 %v2586, 0.2
        %v2688 = vmul.f32 %v2590, 0.2
        %v2689 = vmul.f32 %v2592, 0.2
        %v2690 = vmul.f32 %v2594, 0.2
        %v2691 = vmul.f32 %v2596, 0.2
        %v2692 = vmul.f32 %v2600, 0.2
        %v2693 = vmul.f32 %v2602, 0.2
        %v2694 = vmul.f32 %v2604, 0.2
        %v2695 = vmul.f32 %v2606, 0.2
        %v2696 = vmul.f32 %v2610, 0.2
        %v2697 = vmul.f32 %v2612, 0.2
        %v2698 = vmul.f32 %v2614, 0.2
        %v2699 = vmul.f32 %v2616, 0.2
        %v2700 = vmul.f32 %v2620, 0.2
        %v2701 = vmul.f32 %v2622, 0.2
        %v2702 = vmul.f32 %v2624, 0.2
        %v2703 = vmul.f32 %v2626, 0.2
        %v2704 = vmul.f32 %v2630, 0.2
        %v2705 = vmul.f32 %v2632, 0.2
        %v2706 = vmul.f32 %v2634, 0.2
        %v2707 = vmul.f32 %v2636, 0.2
        %v2708 = vmul.f32 %v2640, 0.2
        %v2709 = vmul.f32 %v2642, 0.2
        %v2710 = vmul.f32 %v2644, 0.2
        %v2711 = vmul.f32 %v2646, 0.2
        %v2712 = vsel %vm2648, %v2570, %v2680
        %v2713 = vsel %vm2649, %v2572, %v2681
        %v2714 = vsel %vm2650, %v2574, %v2682
        %v2715 = vsel %vm2651, %v2576, %v2683
        %v2716 = vsel %vm2652, %v2580, %v2684
        %v2717 = vsel %vm2653, %v2582, %v2685
        %v2718 = vsel %vm2654, %v2584, %v2686
        %v2719 = vsel %vm2655, %v2586, %v2687
        %v2720 = vsel %vm2656, %v2590, %v2688
        %v2721 = vsel %vm2657, %v2592, %v2689
        %v2722 = vsel %vm2658, %v2594, %v2690
        %v2723 = vsel %vm2659, %v2596, %v2691
        %v2724 = vsel %vm2660, %v2600, %v2692
        %v2725 = vsel %vm2661, %v2602, %v2693
        %v2726 = vsel %vm2662, %v2604, %v2694
        %v2727 = vsel %vm2663, %v2606, %v2695
        %v2728 = vsel %vm2664, %v2610, %v2696
        %v2729 = vsel %vm2665, %v2612, %v2697
        %v2730 = vsel %vm2666, %v2614, %v2698
        %v2731 = vsel %vm2667, %v2616, %v2699
        %v2732 = vsel %vm2668, %v2620, %v2700
        %v2733 = vsel %vm2669, %v2622, %v2701
        %v2734 = vsel %vm2670, %v2624, %v2702
        %v2735 = vsel %vm2671, %v2626, %v2703
        %v2736 = vsel %vm2672, %v2630, %v2704
        %v2737 = vsel %vm2673, %v2632, %v2705
        %v2738 = vsel %vm2674, %v2634, %v2706
        %v2739 = vsel %vm2675, %v2636, %v2707
        %v2740 = vsel %vm2676, %v2640, %v2708
        %v2741 = vsel %vm2677, %v2642, %v2709
        %v2742 = vsel %vm2678, %v2644, %v2710
        %v2743 = vsel %vm2679, %v2646, %v2711
        %v2744 = vpack.c.bf16 %v2714, %v2712
        %v2745 = vpack.c.bf16 %v2715, %v2713
        %v2746 = vpack.c.bf16 %v2718, %v2716
        %v2747 = vpack.c.bf16 %v2719, %v2717
        %v2748 = vpack.c.bf16 %v2722, %v2720
        %v2749 = vpack.c.bf16 %v2723, %v2721
        %v2750 = vpack.c.bf16 %v2726, %v2724
        %v2751 = vpack.c.bf16 %v2727, %v2725
        %v2752 = vpack.c.bf16 %v2730, %v2728
        %v2753 = vpack.c.bf16 %v2731, %v2729
        %v2754 = vpack.c.bf16 %v2734, %v2732
        %v2755 = vpack.c.bf16 %v2735, %v2733
        %v2756 = vpack.c.bf16 %v2738, %v2736
        %v2757 = vpack.c.bf16 %v2739, %v2737
        %v2758 = vpack.c.bf16 %v2742, %v2740
        %v2759 = vpack.c.bf16 %v2743, %v2741
        %v2760 = vld [vmem:[%s9] sm:$0xf]
        %v2761 = vld [vmem:[%s9 + $0x4] sm:$0xf]
        %v2762 = vld [vmem:[%s9 + $0x8] sm:$0xf]
        %v2763 = vld [vmem:[%s9 + $0xc] sm:$0xf]
        %v2764 = vld [vmem:[%s9 + $0x10] sm:$0xf]
        %v2765 = vld [vmem:[%s9 + $0x14] sm:$0xf]
        %v2766 = vld [vmem:[%s9 + $0x18] sm:$0xf]
        %v2767 = vld [vmem:[%s9 + $0x1c] sm:$0xf]
        %v2768 = vld [vmem:[%s9 + $0x20] sm:$0xf]
        %v2769 = vld [vmem:[%s9 + $0x24] sm:$0xf]
        %v2770 = vld [vmem:[%s9 + $0x28] sm:$0xf]
        %v2771 = vld [vmem:[%s9 + $0x2c] sm:$0xf]
        %v2772 = vld [vmem:[%s9 + $0x30] sm:$0xf]
        %v2773 = vld [vmem:[%s9 + $0x34] sm:$0xf]
        %v2774 = vld [vmem:[%s9 + $0x38] sm:$0xf]
        %v2775 = vld [vmem:[%s9 + $0x3c] sm:$0xf]
        %v2776 = vld [vmem:[%s9 + $0x40] sm:$0xf]
        %v2777 = vld [vmem:[%s9 + $0x44] sm:$0xf]
        %v2778 = vld [vmem:[%s9 + $0x48] sm:$0xf]
        %v2779 = vld [vmem:[%s9 + $0x4c] sm:$0xf]
        %v2780 = vld [vmem:[%s9 + $0x50] sm:$0xf]
        %v2781 = vld [vmem:[%s9 + $0x54] sm:$0xf]
        %v2782 = vld [vmem:[%s9 + $0x58] sm:$0xf]
        %v2783 = vld [vmem:[%s9 + $0x5c] sm:$0xf]
        %v2784 = vld [vmem:[%s9 + $0x60] sm:$0xf]
        %v2785 = vld [vmem:[%s9 + $0x64] sm:$0xf]
        %v2786 = vld [vmem:[%s9 + $0x68] sm:$0xf]
        %v2787 = vld [vmem:[%s9 + $0x6c] sm:$0xf]
        %v2788 = vld [vmem:[%s9 + $0x70] sm:$0xf]
        %v2789 = vld [vmem:[%s9 + $0x74] sm:$0xf]
        %v2790 = vld [vmem:[%s9 + $0x78] sm:$0xf]
        %v2791 = vld [vmem:[%s9 + $0x7c] sm:$0xf]
        %v2824 = vunpack.c.l.b16 %v2760
        %v2825 = vunpack.c.l.b16 %v2761
        %v2826 = vunpack.c.l.b16 %v2762
        %v2827 = vunpack.c.l.b16 %v2763
        %v2828 = vunpack.c.l.b16 %v2764
        %v2829 = vunpack.c.l.b16 %v2765
        %v2830 = vunpack.c.l.b16 %v2766
        %v2831 = vunpack.c.l.b16 %v2767
        %v2832 = vunpack.c.l.b16 %v2768
        %v2833 = vunpack.c.l.b16 %v2769
        %v2834 = vunpack.c.l.b16 %v2770
        %v2835 = vunpack.c.l.b16 %v2771
        %v2836 = vunpack.c.l.b16 %v2772
        %v2837 = vunpack.c.l.b16 %v2773
        %v2838 = vunpack.c.l.b16 %v2774
        %v2839 = vunpack.c.l.b16 %v2775
        %v2840 = vunpack.c.l.b16 %v2776
        %v2841 = vunpack.c.l.b16 %v2777
        %v2842 = vunpack.c.l.b16 %v2778
        %v2843 = vunpack.c.l.b16 %v2779
        %v2844 = vunpack.c.l.b16 %v2780
        %v2845 = vunpack.c.l.b16 %v2781
        %v2846 = vunpack.c.l.b16 %v2782
        %v2847 = vunpack.c.l.b16 %v2783
        %v2848 = vunpack.c.l.b16 %v2784
        %v2849 = vunpack.c.l.b16 %v2785
        %v2850 = vunpack.c.l.b16 %v2786
        %v2851 = vunpack.c.l.b16 %v2787
        %v2852 = vunpack.c.l.b16 %v2788
        %v2853 = vunpack.c.l.b16 %v2789
        %v2854 = vunpack.c.l.b16 %v2790
        %v2855 = vunpack.c.l.b16 %v2791
        %v2856 = vpack.c.b16 %v2825, %v2824
        %v2857 = vpack.c.b16 %v2827, %v2826
        %v2858 = vpack.c.b16 %v2829, %v2828
        %v2859 = vpack.c.b16 %v2831, %v2830
        %v2860 = vpack.c.b16 %v2833, %v2832
        %v2861 = vpack.c.b16 %v2835, %v2834
        %v2862 = vpack.c.b16 %v2837, %v2836
        %v2863 = vpack.c.b16 %v2839, %v2838
        %v2864 = vpack.c.b16 %v2841, %v2840
        %v2865 = vpack.c.b16 %v2843, %v2842
        %v2866 = vpack.c.b16 %v2845, %v2844
        %v2867 = vpack.c.b16 %v2847, %v2846
        %v2868 = vpack.c.b16 %v2849, %v2848
        %v2869 = vpack.c.b16 %v2851, %v2850
        %v2870 = vpack.c.b16 %v2853, %v2852
        %v2871 = vpack.c.b16 %v2855, %v2854
        %2888 = vmatprep.subr.bf16.mxu0 0
        %2889 = vmatpush1.bf16.msra.mxu0 %v2863
        %2890 = vmatprep.subr.bf16.mxu0 0
        %2891 = vmatpush1.bf16.msra.mxu0 %v2862
        %2892 = vmatprep.subr.bf16.mxu0 0
        %2893 = vmatpush1.bf16.msra.mxu0 %v2861
        %2894 = vmatprep.subr.bf16.mxu0 0
        %2895 = vmatpush1.bf16.msra.mxu0 %v2860
        %2896 = vmatprep.subr.bf16.mxu0 0
        %2897 = vmatpush1.bf16.msra.mxu0 %v2859
        %2898 = vmatprep.subr.bf16.mxu0 0
        %2899 = vmatpush1.bf16.msra.mxu0 %v2858
        %2900 = vmatprep.subr.bf16.mxu0 0
        %2901 = vmatpush1.bf16.msra.mxu0 %v2857
        %2902 = vmatprep.subr.bf16.mxu0 0
        %2903 = vmatpush1.bf16.msra.mxu0 %v2856
        %2904 = vmatprep.subr.bf16.mxu0 0
        %2905 = vmatpush2.bf16.msra.mxu0 %v2871
        %2906 = vmatprep.subr.bf16.mxu0 0
        %2907 = vmatpush2.bf16.msra.mxu0 %v2870
        %2908 = vmatprep.subr.bf16.mxu0 0
        %2909 = vmatpush2.bf16.msra.mxu0 %v2869
        %2910 = vmatprep.subr.bf16.mxu0 0
        %2911 = vmatpush2.bf16.msra.mxu0 %v2868
        %2912 = vmatprep.subr.bf16.mxu0 0
        %2913 = vmatpush2.bf16.msra.mxu0 %v2867
        %2914 = vmatprep.subr.bf16.mxu0 0
        %2915 = vmatpush2.bf16.msra.mxu0 %v2866
        %2916 = vmatprep.subr.bf16.mxu0 0
        %2917 = vmatpush2.bf16.msra.mxu0 %v2865
        %2918 = vmatprep.subr.bf16.mxu0 0
        %2919 = vmatpush2.bf16.msra.mxu0 %v2864
        %2920 = vmatprep.mubr.bf16.mxu0 %v2745
        %2921 = vmatmul.mubr.bf16.gmra.mxu0 %v2744
        %v2922 = vpop.f32.mrf.mxu0
        %v2923 = vadd.f32 0.0, %v2922
        %v2924 = vpop.f32.mrf.mxu0
        %v2925 = vpop.f32.mrf.mxu0
        %v2926 = vadd.f32 0.0, %v2925
        %v2927 = vpop.f32.mrf.mxu0
        %2928 = vmatprep.mubr.bf16.mxu0 %v2747
        %2929 = vmatmul.mubr.bf16.gmra.mxu0 %v2746
        %v2930 = vpop.f32.mrf.mxu0
        %v2931 = vadd.f32 0.0, %v2930
        %v2932 = vpop.f32.mrf.mxu0
        %v2933 = vpop.f32.mrf.mxu0
        %v2934 = vadd.f32 0.0, %v2933
        %v2935 = vpop.f32.mrf.mxu0
        %2936 = vmatprep.mubr.bf16.mxu0 %v2749
        %2937 = vmatmul.mubr.bf16.gmra.mxu0 %v2748
        %v2938 = vpop.f32.mrf.mxu0
        %v2939 = vadd.f32 0.0, %v2938
        %v2940 = vpop.f32.mrf.mxu0
        %v2941 = vpop.f32.mrf.mxu0
        %v2942 = vadd.f32 0.0, %v2941
        %v2943 = vpop.f32.mrf.mxu0
        %2944 = vmatprep.mubr.bf16.mxu0 %v2751
        %2945 = vmatmul.mubr.bf16.gmra.mxu0 %v2750
        %v2946 = vpop.f32.mrf.mxu0
        %v2947 = vadd.f32 0.0, %v2946
        %v2948 = vpop.f32.mrf.mxu0
        %v2949 = vpop.f32.mrf.mxu0
        %v2950 = vadd.f32 0.0, %v2949
        %v2951 = vpop.f32.mrf.mxu0
        %2952 = vmatprep.mubr.bf16.mxu0 %v2753
        %2953 = vmatmul.mubr.bf16.gmra.mxu0 %v2752
        %v2954 = vpop.f32.mrf.mxu0
        %v2955 = vadd.f32 0.0, %v2954
        %v2956 = vpop.f32.mrf.mxu0
        %v2957 = vpop.f32.mrf.mxu0
        %v2958 = vadd.f32 0.0, %v2957
        %v2959 = vpop.f32.mrf.mxu0
        %2960 = vmatprep.mubr.bf16.mxu0 %v2755
        %2961 = vmatmul.mubr.bf16.gmra.mxu0 %v2754
        %v2962 = vpop.f32.mrf.mxu0
        %v2963 = vadd.f32 0.0, %v2962
        %v2964 = vpop.f32.mrf.mxu0
        %v2965 = vpop.f32.mrf.mxu0
        %v2966 = vadd.f32 0.0, %v2965
        %v2967 = vpop.f32.mrf.mxu0
        %2968 = vmatprep.mubr.bf16.mxu0 %v2757
        %2969 = vmatmul.mubr.bf16.gmra.mxu0 %v2756
        %v2970 = vpop.f32.mrf.mxu0
        %v2971 = vadd.f32 0.0, %v2970
        %v2972 = vpop.f32.mrf.mxu0
        %v2973 = vpop.f32.mrf.mxu0
        %v2974 = vadd.f32 0.0, %v2973
        %v2975 = vpop.f32.mrf.mxu0
        %2976 = vmatprep.mubr.bf16.mxu0 %v2759
        %2977 = vmatmul.mubr.bf16.gmra.mxu0 %v2758
        %v2978 = vpop.f32.mrf.mxu0
        %v2979 = vadd.f32 0.0, %v2978
        %v2980 = vpop.f32.mrf.mxu0
        %v2981 = vpop.f32.mrf.mxu0
        %v2982 = vadd.f32 0.0, %v2981
        %v2983 = vpop.f32.mrf.mxu0
        %2984 = vdwg.mxu0
        %vm2985 = vcmask 523264
        %2986 = vst.msk [vmem:[%s420] sm:$0xff] %vm2985, %v2923
        %2987 = vst.msk [vmem:[%s420 + $0x8] sm:$0xff] %vm2985, %v2926
        %2988 = vst.msk [vmem:[%s420 + $0x10] sm:$0xff] %vm2985, %v2931
        %2989 = vst.msk [vmem:[%s420 + $0x18] sm:$0xff] %vm2985, %v2934
        %2990 = vst.msk [vmem:[%s420 + $0x20] sm:$0xff] %vm2985, %v2939
        %2991 = vst.msk [vmem:[%s420 + $0x28] sm:$0xff] %vm2985, %v2942
        %2992 = vst.msk [vmem:[%s420 + $0x30] sm:$0xff] %vm2985, %v2947
        %2993 = vst.msk [vmem:[%s420 + $0x38] sm:$0xff] %vm2985, %v2950
        %2994 = vst.msk [vmem:[%s420 + $0x40] sm:$0xff] %vm2985, %v2955
        %2995 = vst.msk [vmem:[%s420 + $0x48] sm:$0xff] %vm2985, %v2958
        %2996 = vst.msk [vmem:[%s420 + $0x50] sm:$0xff] %vm2985, %v2963
        %2997 = vst.msk [vmem:[%s420 + $0x58] sm:$0xff] %vm2985, %v2966
        %2998 = vst.msk [vmem:[%s420 + $0x60] sm:$0xff] %vm2985, %v2971
        %2999 = vst.msk [vmem:[%s420 + $0x68] sm:$0xff] %vm2985, %v2974
        %3000 = vst.msk [vmem:[%s420 + $0x70] sm:$0xff] %vm2985, %v2979
        %3001 = vst.msk [vmem:[%s420 + $0x78] sm:$0xff] %vm2985, %v2982
        %s3002 = smul.u32 16, %s24
        %p3003 = scmp.lt.s32.totalorder %s3002, 31
        %s3004 = scalar_select %p3003, %s3002, 31
        %s3005 = smul.addr %s3004, 8
        %s3006 = scalar_lea.vmem %s10, %s3005
        // Predicated region
        $region77: #{tpu_custom_call.1} parent=59 // pred_check
          %p3007 = pneg %p257
        $region78: #{tpu_custom_call.1} parent=59 // pred_check_branch
          %3009 = sbr.rel (%p3007) target = $region80
        $region79: #{tpu_custom_call.1} parent=59 // pred_region
          %s3010 = smul.u32 16, %s24
        $region80: #{tpu_custom_call.1} parent=59 // pred_fallthru
          _
      $region60: #{tpu_custom_call.1} parent=5 // pred_fallthru
        _
      %p3011 = scmp.le.s32.totalorder 2, %s19
      // Predicated region
      $region81: #{tpu_custom_call.1} parent=5 // pred_check
        %p3012 = pneg %p3011
      $region82: #{tpu_custom_call.1} parent=5 // pred_check_branch
        %3014 = sbr.rel (%p3012) target = $region84
      $region83: #{tpu_custom_call.1} parent=5 // pred_region
        %s3015 = ssub.s32 %s19, 2
        // Predicated region
        $region85: #{tpu_custom_call.1} parent=83 // pred_check
          %p3016 = pneg %p263
        $region86: #{tpu_custom_call.1} parent=83 // pred_check_branch
          %3018 = sbr.rel (%p3016) target = $region88
        $region87: #{tpu_custom_call.1} parent=83 // pred_region
          %s3019 = smul.u32 16, %s25
          %p3020 = scmp.lt.s32.totalorder %s3019, 31
          %s3021 = scalar_select %p3020, %s3019, 31
          %s3022 = smul.addr %s3021, 8
          %s3023 = scalar_lea.vmem %s10, %s3022
        $region88: #{tpu_custom_call.1} parent=83 // pred_fallthru
          _
      $region84: #{tpu_custom_call.1} parent=5 // pred_fallthru
        _
    $region6: #{tpu_custom_call.1} parent=1 // loop_footer
      %s23 = sadd.s32 1, %s19
    $region7: #{tpu_custom_call.1} parent=1 // loop_footer_branch
      %18 = sbr.rel target = $region3
    $region8: #{tpu_custom_call.1} parent=1 // loop_exit
      _
    %3024 = vsyncpa [#allocation3], 1
    %s3025 = scalar_lea.sflag [#allocation3], 1
    %3026 = vsyncpa %s3025, 1
    %3027 = vsyncpa [#allocation5], 1
    %3028 = vsyncpa [#allocation8], 1

</llo_original>
